<compile_context>
chip_gen: v7x
topology: tpu7x:2x2x1
jax: 0.10.0
libtpu: 0.0.40
codegen_flags: <defaults>
</compile_context>

<pallas_src>
import functools

import jax
import jax.numpy as jnp
from jax.experimental import pallas as pl
from jax.experimental.pallas import tpu as pltpu

BETA = 0.9      # snn.Leaky(beta=0.9)
THRESH = 1.0    # snntorch default threshold, reset="subtract"


def _round_up(v, m):
    return (v + m - 1) // m * m


def _snn_block_kernel(x_ref, w1_ref, b1_ref, w2_ref, b2_ref,
                      spk_ref, mem_ref, pad_sc, im_sc,
                      *, H, W, Cp, SEGP, B_blk):
    """One grid step = B_blk images, lane-dense.

    x_ref  : (Cp, B_blk*SEGP) bf16  zero-padded images, per-image stride SEGP (mult of 128)
    w*_ref : (Cp, 9*Cp)       bf16  BN-scale-folded conv weights, tap-major (k*Cp + ci)
    b*_ref : (Cp, 1)          f32   folded BN bias
    spk_ref: (Cp, B_blk*SEGP) f32   spk2 (wide layout; wrapper narrows + adds identity)
    mem_ref: (Cp, B_blk*SEGP) f32   final membrane (wide layout)
    pad_sc : (Cp, B_blk*SEGP + TAIL) bf16  shared padded-image scratch (x, then spk1)
    im_sc  : (9*Cp, B_blk*SEGP)      bf16  im2col operand scratch (reused by both stages)
    """
    Wp = W + 2
    HWw = H * Wp                    # valid wide length per image
    L = B_blk * SEGP                # matmul N / lane width per grid step
    TAIL = 2 * Wp + 2               # max tap offset -> read-overrun slack past last image

    # Keep the tap-overrun tail finite/deterministic (tiny store, done every step so the
    # kernel does not depend on scratch persistence across grid steps / cores).
    pad_sc[:, L:L + TAIL] = jnp.zeros((Cp, TAIL), jnp.bfloat16)

    def conv_bn(w_ref, b_ref):
        # 9 shifted, contiguous lane-slices of the padded image -> persistent im2col
        # scratch (sublane-aligned dense stores, no concatenate relayout), then a single
        # K = 9*Cp MXU contraction (bf16 operands, f32 accumulate) + folded BN bias.
        for k in range(9):
            off = (k // 3) * Wp + (k % 3)
            im_sc[k * Cp:(k + 1) * Cp, :] = pad_sc[:, off:off + L]
        return jnp.dot(w_ref[...], im_sc[...],
                       preferred_element_type=jnp.float32) + b_ref[...]

    # ---- stage 1: conv1 + bn1 + LIF1 (membrane starts at 0) ----
    pad_sc[:, :L] = x_ref[...]                         # full-width aligned copy
    y1 = conv_bn(w1_ref, b1_ref)                       # (Cp, L) f32
    mem1 = y1                                          # beta*0 + y1 - 0*thresh
    spk1 = (mem1 > THRESH).astype(jnp.float32)

    # ---- stage 2: re-pad spk1 in place; masked lanes supply the halo zeros ----
    pos = jax.lax.broadcasted_iota(jnp.int32, (1, L), 1) % SEGP
    valid = (pos < HWw) & ((pos % Wp) < W)             # lanes that are real pixels
    pad_sc[:, Wp + 1:Wp + 1 + L] = jnp.where(valid, spk1, 0.0).astype(jnp.bfloat16)
    y2 = conv_bn(w2_ref, b2_ref)                       # (Cp, L) f32
    mem2 = BETA * mem1 + y2 - spk1 * THRESH            # reset = (mem1 > thresh) = spk1
    spk_ref[...] = (mem2 > THRESH).astype(jnp.float32)
    mem_ref[...] = mem2


def _fold_bn(gamma, beta, running_mean, running_var, eps=1e-5):
    scale = gamma / jnp.sqrt(running_var + eps)
    bias = beta - running_mean * scale
    return scale.astype(jnp.float32), bias.astype(jnp.float32)


def _fold_conv_weight(w_oihw, scale, Cp):
    """OIHW -> (Cp, 9*Cp) bf16, tap-major columns (k*Cp + ci), BN scale folded in."""
    O, I = w_oihw.shape[0], w_oihw.shape[1]
    w = w_oihw.astype(jnp.float32) * scale[:, None, None, None]
    w = jnp.transpose(w, (0, 2, 3, 1)).reshape(O, 9, I)          # (O, k=kh*3+kw, ci)
    w = jnp.pad(w, ((0, Cp - O), (0, 0), (0, Cp - I)))
    return w.reshape(Cp, 9 * Cp).astype(jnp.bfloat16)


@jax.jit
def snn_basic_block_forward(x_nchw, w1_oihw, w2_oihw, bn1, bn2):
    """SNNBasicBlock forward (stride=1, downsample=None, mem=None)."""
    n, cin, H, W = x_nchw.shape
    cout = w1_oihw.shape[0]
    if cin != cout or w2_oihw.shape[0] != cout:
        # residual add with downsample=None requires matching channels
        raise ValueError("SNNBasicBlock residual path requires in_channels == out_channels")

    Hp, Wp = H + 2, W + 2
    SEG = Hp * Wp                        # flat padded image length
    HWw = H * Wp                         # valid wide output length per image
    SEGP = _round_up(SEG, 128)           # lane-aligned per-image stride
    Cp = _round_up(max(cin, 8), 16)      # bf16 sublane tile
    TAIL = 2 * Wp + 2

    # images per grid step: largest divisor of n keeping the per-step lane width modest
    B_blk = 1
    for cand in range(1, n + 1):
        if n % cand == 0 and cand * SEGP <= 4096:
            B_blk = cand
    n_steps = n // B_blk
    L = B_blk * SEGP

    # ---- fold BN (inference running stats) into the conv weights ----
    s1, b1 = _fold_bn(*bn1)
    s2, b2 = _fold_bn(*bn2)
    w1f = _fold_conv_weight(w1_oihw, s1, Cp)
    w2f = _fold_conv_weight(w2_oihw, s2, Cp)
    b1c = jnp.pad(b1, (0, Cp - cout)).reshape(Cp, 1)
    b2c = jnp.pad(b2, (0, Cp - cout)).reshape(Cp, 1)

    # ---- wrapper-side layout: halo-pad, channel-pad, images side-by-side on lanes ----
    x32 = x_nchw.astype(jnp.float32)
    xp = jnp.pad(x32, ((0, 0), (0, 0), (1, 1), (1, 1))).reshape(n, cin, SEG)
    xp = jnp.pad(xp, ((0, 0), (0, Cp - cin), (0, SEGP - SEG)))            # (n, Cp, SEGP)
    x_lanes = jnp.transpose(xp, (1, 0, 2)).reshape(Cp, n * SEGP).astype(jnp.bfloat16)

    kernel = functools.partial(_snn_block_kernel,
                               H=H, W=W, Cp=Cp, SEGP=SEGP, B_blk=B_blk)

    spk_wide, mem_wide = pl.pallas_call(
        kernel,
        out_shape=(jax.ShapeDtypeStruct((Cp, n * SEGP), jnp.float32),
                   jax.ShapeDtypeStruct((Cp, n * SEGP), jnp.float32)),
        grid_spec=pltpu.PrefetchScalarGridSpec(
            num_scalar_prefetch=0,
            grid=(n_steps,),
            in_specs=[
                pl.BlockSpec((Cp, L), lambda i: (0, i)),        # padded images (bf16)
                pl.BlockSpec((Cp, 9 * Cp), lambda i: (0, 0)),   # folded conv1 weight (bf16)
                pl.BlockSpec((Cp, 1), lambda i: (0, 0)),        # bn1 bias (f32)
                pl.BlockSpec((Cp, 9 * Cp), lambda i: (0, 0)),   # folded conv2 weight (bf16)
                pl.BlockSpec((Cp, 1), lambda i: (0, 0)),        # bn2 bias (f32)
            ],
            out_specs=[
                pl.BlockSpec((Cp, L), lambda i: (0, i)),        # spk2 (wide, lane-dense)
                pl.BlockSpec((Cp, L), lambda i: (0, i)),        # mem2 (wide, lane-dense)
            ],
            scratch_shapes=[
                pltpu.VMEM((Cp, L + TAIL), jnp.bfloat16),       # shared padded image (x / spk1)
                pltpu.VMEM((9 * Cp, L), jnp.bfloat16),          # im2col operand
            ],
        ),
        compiler_params=pltpu.CompilerParams(
            dimension_semantics=("parallel",),                  # batch blocks independent
            vmem_limit_bytes=32 * 1024 * 1024),
        # TODO(synk): for very large C / feature maps on v7x (64 MiB VMEM), add a
        #             spatial row-band grid axis and single-buffer the weight specs.
    )(x_lanes, w1f, b1c, w2f, b2c)

    # ---- narrow the wide outputs + residual add (layout plumbing, wrapper side) ----
    def narrow(a):
        a = a.reshape(Cp, n, SEGP)[:, :, :HWw].reshape(Cp, n, H, Wp)[..., :W]
        return jnp.transpose(a, (1, 0, 2, 3))[:, :cout]

    spk2 = narrow(spk_wide)
    mem2 = narrow(mem_wide)
    return spk2 + x32, mem2                                     # out = spk2 + identity


def _reference(x, w1, w2, bn1, bn2):
    """Pure-JAX reference using the same bf16-operand / f32-accumulate contraction."""
    s1, b1 = _fold_bn(*bn1)
    s2, b2 = _fold_bn(*bn2)

    def conv(a, w, s):
        wf = (w.astype(jnp.float32) * s[:, None, None, None]).astype(jnp.bfloat16)
        return jax.lax.conv_general_dilated(
            a.astype(jnp.bfloat16), wf, (1, 1), 'SAME',
            dimension_numbers=('NCHW', 'OIHW', 'NCHW'),
            preferred_element_type=jnp.float32)

    x = x.astype(jnp.float32)
    y1 = conv(x, w1, s1) + b1[None, :, None, None]
    mem1 = y1                                        # mem_prev = 0, reset = 0
    spk1 = (mem1 > THRESH).astype(jnp.float32)
    y2 = conv(spk1, w2, s2) + b2[None, :, None, None]
    mem2 = BETA * mem1 + y2 - spk1 * THRESH
    spk2 = (mem2 > THRESH).astype(jnp.float32)
    return spk2 + x, mem2


if __name__ == "__main__":
    N, C, H, W = 2, 4, 16, 16          # in_channels == out_channels, stride=1
    key = jax.random.PRNGKey(0)
    kx, kw1, kw2, kg1, kb1, km1, kv1, kg2, kb2, km2, kv2 = jax.random.split(key, 11)

    x = jax.random.normal(kx, (N, C, H, W), jnp.float32)
    w1 = 0.3 * jax.random.normal(kw1, (C, C, 3, 3), jnp.float32)     # OIHW
    w2 = 0.3 * jax.random.normal(kw2, (C, C, 3, 3), jnp.float32)

    bn1 = (1.0 + 0.1 * jax.random.normal(kg1, (C,), jnp.float32),    # gamma
           0.1 * jax.random.normal(kb1, (C,), jnp.float32),          # beta
           0.1 * jax.random.normal(km1, (C,), jnp.float32),          # running_mean
           0.9 + 0.1 * jnp.abs(jax.random.normal(kv1, (C,), jnp.float32)))  # running_var
    bn2 = (1.0 + 0.1 * jax.random.normal(kg2, (C,), jnp.float32),
           0.1 * jax.random.normal(kb2, (C,), jnp.float32),
           0.1 * jax.random.normal(km2, (C,), jnp.float32),
           0.9 + 0.1 * jnp.abs(jax.random.normal(kv2, (C,), jnp.float32)))

    out, mem = snn_basic_block_forward(x, w1, w2, bn1, bn2)
    out, mem = jax.block_until_ready((out, mem))

    ref_out, ref_mem = _reference(x, w1, w2, bn1, bn2)
    assert out.shape == (N, C, H, W) and mem.shape == (N, C, H, W)
    assert jnp.allclose(mem, ref_mem, atol=2e-3, rtol=2e-3)
    assert jnp.allclose(out, ref_out, atol=2e-3, rtol=2e-3)

    print("KERNEL_OK")
</pallas_src>

<mosaic_0001>
module attributes {stable_mosaic.version = 11 : i64} {
  func.func @_snn_block_kernel(%arg0: i32, %arg1: memref<16x768xbf16, #tpu.memory_space<vmem>>, %arg2: memref<16x144xbf16, #tpu.memory_space<vmem>>, %arg3: memref<16x1xf32, #tpu.memory_space<vmem>>, %arg4: memref<16x144xbf16, #tpu.memory_space<vmem>>, %arg5: memref<16x1xf32, #tpu.memory_space<vmem>>, %arg6: memref<16x768xf32, #tpu.memory_space<vmem>>, %arg7: memref<16x768xf32, #tpu.memory_space<vmem>>, %arg8: memref<16x806xbf16, #tpu.memory_space<vmem>>, %arg9: memref<144x768xbf16, #tpu.memory_space<vmem>>) attributes {dimension_semantics = [#tpu.dimension_semantics<parallel>], iteration_bounds = array<i64: 1>, scalar_prefetch = 0 : i64, scratch_operands = 2 : i64, tpu.core_type = #tpu.core_type<tc>, window_params = [{transform_indices = @transform_0, window_bounds = array<i64: 16, 768>}, {pipeline_mode = #tpu.pipeline_mode<synchronous>, transform_indices = @transform_1, window_bounds = array<i64: 16, 144>}, {pipeline_mode = #tpu.pipeline_mode<synchronous>, transform_indices = @transform_2, window_bounds = array<i64: 16, 1>}, {pipeline_mode = #tpu.pipeline_mode<synchronous>, transform_indices = @transform_3, window_bounds = array<i64: 16, 144>}, {pipeline_mode = #tpu.pipeline_mode<synchronous>, transform_indices = @transform_4, window_bounds = array<i64: 16, 1>}, {transform_indices = @transform_5, window_bounds = array<i64: 16, 768>}, {transform_indices = @transform_6, window_bounds = array<i64: 16, 768>}]} {
    %cst = arith.constant 0.000000e+00 : bf16
    %0 = vector.broadcast %cst : bf16 to vector<16x38xbf16>
    %c0 = arith.constant 0 : index
    %c768 = arith.constant 768 : index
    %1 = vector.load %arg8[%c0, %c768] : memref<16x806xbf16, #tpu.memory_space<vmem>>, vector<16x38xbf16>
    tpu.vector_store %arg8[%c0, %c768], %0 {strides = array<i32>} : memref<16x806xbf16, #tpu.memory_space<vmem>>, vector<16x38xbf16>,
    %c0_0 = arith.constant 0 : index
    %c0_1 = arith.constant 0 : index
    %2 = vector.load %arg1[%c0_0, %c0_1] : memref<16x768xbf16, #tpu.memory_space<vmem>>, vector<16x768xbf16>
    %c0_2 = arith.constant 0 : index
    %c0_3 = arith.constant 0 : index
    %3 = vector.load %arg8[%c0_2, %c0_3] : memref<16x806xbf16, #tpu.memory_space<vmem>>, vector<16x768xbf16>
    tpu.vector_store %arg8[%c0_2, %c0_3], %2 {strides = array<i32>} : memref<16x806xbf16, #tpu.memory_space<vmem>>, vector<16x768xbf16>,
    %c0_4 = arith.constant 0 : index
    %c0_5 = arith.constant 0 : index
    %4 = vector.load %arg8[%c0_4, %c0_5] : memref<16x806xbf16, #tpu.memory_space<vmem>>, vector<16x768xbf16>
    %c0_6 = arith.constant 0 : index
    %c0_7 = arith.constant 0 : index
    %5 = vector.load %arg9[%c0_6, %c0_7] : memref<144x768xbf16, #tpu.memory_space<vmem>>, vector<16x768xbf16>
    tpu.vector_store %arg9[%c0_6, %c0_7], %4 {strides = array<i32>} : memref<144x768xbf16, #tpu.memory_space<vmem>>, vector<16x768xbf16>,
    %c0_8 = arith.constant 0 : index
    %c1 = arith.constant 1 : index
    %6 = vector.load %arg8[%c0_8, %c1] : memref<16x806xbf16, #tpu.memory_space<vmem>>, vector<16x768xbf16>
    %c16 = arith.constant 16 : index
    %c0_9 = arith.constant 0 : index
    %7 = vector.load %arg9[%c16, %c0_9] : memref<144x768xbf16, #tpu.memory_space<vmem>>, vector<16x768xbf16>
    tpu.vector_store %arg9[%c16, %c0_9], %6 {strides = array<i32>} : memref<144x768xbf16, #tpu.memory_space<vmem>>, vector<16x768xbf16>,
    %c0_10 = arith.constant 0 : index
    %c2 = arith.constant 2 : index
    %8 = vector.load %arg8[%c0_10, %c2] : memref<16x806xbf16, #tpu.memory_space<vmem>>, vector<16x768xbf16>
    %c32 = arith.constant 32 : index
    %c0_11 = arith.constant 0 : index
    %9 = vector.load %arg9[%c32, %c0_11] : memref<144x768xbf16, #tpu.memory_space<vmem>>, vector<16x768xbf16>
    tpu.vector_store %arg9[%c32, %c0_11], %8 {strides = array<i32>} : memref<144x768xbf16, #tpu.memory_space<vmem>>, vector<16x768xbf16>,
    %c0_12 = arith.constant 0 : index
    %c18 = arith.constant 18 : index
    %10 = vector.load %arg8[%c0_12, %c18] : memref<16x806xbf16, #tpu.memory_space<vmem>>, vector<16x768xbf16>
    %c48 = arith.constant 48 : index
    %c0_13 = arith.constant 0 : index
    %11 = vector.load %arg9[%c48, %c0_13] : memref<144x768xbf16, #tpu.memory_space<vmem>>, vector<16x768xbf16>
    tpu.vector_store %arg9[%c48, %c0_13], %10 {strides = array<i32>} : memref<144x768xbf16, #tpu.memory_space<vmem>>, vector<16x768xbf16>,
    %c0_14 = arith.constant 0 : index
    %c19 = arith.constant 19 : index
    %12 = vector.load %arg8[%c0_14, %c19] : memref<16x806xbf16, #tpu.memory_space<vmem>>, vector<16x768xbf16>
    %c64 = arith.constant 64 : index
    %c0_15 = arith.constant 0 : index
    %13 = vector.load %arg9[%c64, %c0_15] : memref<144x768xbf16, #tpu.memory_space<vmem>>, vector<16x768xbf16>
    tpu.vector_store %arg9[%c64, %c0_15], %12 {strides = array<i32>} : memref<144x768xbf16, #tpu.memory_space<vmem>>, vector<16x768xbf16>,
    %c0_16 = arith.constant 0 : index
    %c20 = arith.constant 20 : index
    %14 = vector.load %arg8[%c0_16, %c20] : memref<16x806xbf16, #tpu.memory_space<vmem>>, vector<16x768xbf16>
    %c80 = arith.constant 80 : index
    %c0_17 = arith.constant 0 : index
    %15 = vector.load %arg9[%c80, %c0_17] : memref<144x768xbf16, #tpu.memory_space<vmem>>, vector<16x768xbf16>
    tpu.vector_store %arg9[%c80, %c0_17], %14 {strides = array<i32>} : memref<144x768xbf16, #tpu.memory_space<vmem>>, vector<16x768xbf16>,
    %c0_18 = arith.constant 0 : index
    %c36 = arith.constant 36 : index
    %16 = vector.load %arg8[%c0_18, %c36] : memref<16x806xbf16, #tpu.memory_space<vmem>>, vector<16x768xbf16>
    %c96 = arith.constant 96 : index
    %c0_19 = arith.constant 0 : index
    %17 = vector.load %arg9[%c96, %c0_19] : memref<144x768xbf16, #tpu.memory_space<vmem>>, vector<16x768xbf16>
    tpu.vector_store %arg9[%c96, %c0_19], %16 {strides = array<i32>} : memref<144x768xbf16, #tpu.memory_space<vmem>>, vector<16x768xbf16>,
    %c0_20 = arith.constant 0 : index
    %c37 = arith.constant 37 : index
    %18 = vector.load %arg8[%c0_20, %c37] : memref<16x806xbf16, #tpu.memory_space<vmem>>, vector<16x768xbf16>
    %c112 = arith.constant 112 : index
    %c0_21 = arith.constant 0 : index
    %19 = vector.load %arg9[%c112, %c0_21] : memref<144x768xbf16, #tpu.memory_space<vmem>>, vector<16x768xbf16>
    tpu.vector_store %arg9[%c112, %c0_21], %18 {strides = array<i32>} : memref<144x768xbf16, #tpu.memory_space<vmem>>, vector<16x768xbf16>,
    %c0_22 = arith.constant 0 : index
    %c38 = arith.constant 38 : index
    %20 = vector.load %arg8[%c0_22, %c38] : memref<16x806xbf16, #tpu.memory_space<vmem>>, vector<16x768xbf16>
    %c128 = arith.constant 128 : index
    %c0_23 = arith.constant 0 : index
    %21 = vector.load %arg9[%c128, %c0_23] : memref<144x768xbf16, #tpu.memory_space<vmem>>, vector<16x768xbf16>
    tpu.vector_store %arg9[%c128, %c0_23], %20 {strides = array<i32>} : memref<144x768xbf16, #tpu.memory_space<vmem>>, vector<16x768xbf16>,
    %c0_24 = arith.constant 0 : index
    %c0_25 = arith.constant 0 : index
    %22 = vector.load %arg2[%c0_24, %c0_25] : memref<16x144xbf16, #tpu.memory_space<vmem>>, vector<16x144xbf16>
    %c0_26 = arith.constant 0 : index
    %c0_27 = arith.constant 0 : index
    %23 = vector.load %arg9[%c0_26, %c0_27] : memref<144x768xbf16, #tpu.memory_space<vmem>>, vector<144x768xbf16>
    %cst_28 = arith.constant dense<0.000000e+00> : vector<16x768xf32>
    %24 = tpu.matmul %22, %23, %cst_28 {dimension_numbers = #tpu.dot_dimension_numbers<[1], [0], [0], [1], [0, 0, 1, 1], [], []>} : vector<16x144xbf16>, vector<144x768xbf16>, vector<16x768xf32> -> vector<16x768xf32>
    %c0_29 = arith.constant 0 : index
    %c0_30 = arith.constant 0 : index
    %25 = vector.load %arg3[%c0_29, %c0_30] : memref<16x1xf32, #tpu.memory_space<vmem>>, vector<16x1xf32>
    %26 = vector.broadcast %25 : vector<16x1xf32> to vector<16x768xf32>
    %27 = arith.addf %24, %26 : vector<16x768xf32>
    %cst_31 = arith.constant 1.000000e+00 : f32
    %28 = vector.broadcast %cst_31 : f32 to vector<16x768xf32>
    %29 = arith.cmpf ogt, %27, %28 : vector<16x768xf32>
    %30 = arith.extui %29 : vector<16x768xi1> to vector<16x768xi32>
    %31 = arith.sitofp %30 : vector<16x768xi32> to vector<16x768xf32>
    %32 = tpu.iota {dimensions = array<i32: 1>} : vector<1x768xi32>
    %c384_i32 = arith.constant 384 : i32
    %c0_i32 = arith.constant 0 : i32
    %33 = arith.cmpi eq, %c384_i32, %c0_i32 : i32
    %c1_i32 = arith.constant 1 : i32
    %34 = arith.select %33, %c1_i32, %c384_i32 : i32
    %35 = vector.broadcast %34 : i32 to vector<1x768xi32>
    %36 = arith.remsi %32, %35 : vector<1x768xi32>
    %c0_i32_32 = arith.constant 0 : i32
    %37 = vector.broadcast %c0_i32_32 : i32 to vector<1x768xi32>
    %38 = arith.cmpi ne, %36, %37 : vector<1x768xi32>
    %c0_i32_33 = arith.constant 0 : i32
    %39 = vector.broadcast %c0_i32_33 : i32 to vector<1x768xi32>
    %40 = arith.cmpi slt, %36, %39 : vector<1x768xi32>
    %c0_i32_34 = arith.constant 0 : i32
    %41 = arith.cmpi slt, %34, %c0_i32_34 : i32
    %42 = vector.broadcast %41 : i1 to vector<1x768xi1>
    %43 = vector.broadcast %42 : vector<1x768xi1> to vector<1x768xi1>
    %44 = arith.xori %40, %43 : vector<1x768xi1>
    %45 = arith.andi %44, %38 : vector<1x768xi1>
    %46 = vector.broadcast %34 : i32 to vector<1x768xi32>
    %47 = arith.addi %36, %46 : vector<1x768xi32>
    %48 = arith.select %45, %47, %36 : vector<1x768xi1>, vector<1x768xi32>
    %c288_i32 = arith.constant 288 : i32
    %49 = vector.broadcast %c288_i32 : i32 to vector<1x768xi32>
    %50 = arith.cmpi slt, %48, %49 : vector<1x768xi32>
    %c18_i32 = arith.constant 18 : i32
    %c0_i32_35 = arith.constant 0 : i32
    %51 = arith.cmpi eq, %c18_i32, %c0_i32_35 : i32
    %c1_i32_36 = arith.constant 1 : i32
    %52 = arith.select %51, %c1_i32_36, %c18_i32 : i32
    %53 = vector.broadcast %52 : i32 to vector<1x768xi32>
    %54 = arith.remsi %48, %53 : vector<1x768xi32>
    %c0_i32_37 = arith.constant 0 : i32
    %55 = vector.broadcast %c0_i32_37 : i32 to vector<1x768xi32>
    %56 = arith.cmpi ne, %54, %55 : vector<1x768xi32>
    %c0_i32_38 = arith.constant 0 : i32
    %57 = vector.broadcast %c0_i32_38 : i32 to vector<1x768xi32>
    %58 = arith.cmpi slt, %54, %57 : vector<1x768xi32>
    %c0_i32_39 = arith.constant 0 : i32
    %59 = arith.cmpi slt, %52, %c0_i32_39 : i32
    %60 = vector.broadcast %59 : i1 to vector<1x768xi1>
    %61 = vector.broadcast %60 : vector<1x768xi1> to vector<1x768xi1>
    %62 = arith.xori %58, %61 : vector<1x768xi1>
    %63 = arith.andi %62, %56 : vector<1x768xi1>
    %64 = vector.broadcast %52 : i32 to vector<1x768xi32>
    %65 = arith.addi %54, %64 : vector<1x768xi32>
    %66 = arith.select %63, %65, %54 : vector<1x768xi1>, vector<1x768xi32>
    %c16_i32 = arith.constant 16 : i32
    %67 = vector.broadcast %c16_i32 : i32 to vector<1x768xi32>
    %68 = arith.cmpi slt, %66, %67 : vector<1x768xi32>
    %69 = arith.andi %50, %68 : vector<1x768xi1>
    %cst_40 = arith.constant 0.000000e+00 : f32
    %70 = vector.shape_cast %69 : vector<1x768xi1> to vector<1x768xi1>
    %71 = vector.broadcast %70 : vector<1x768xi1> to vector<16x768xi1>
    %72 = vector.broadcast %cst_40 : f32 to vector<16x768xf32>
    %73 = arith.select %71, %31, %72 : vector<16x768xi1>, vector<16x768xf32>
    %74 = arith.truncf %73 : vector<16x768xf32> to vector<16x768xbf16>
    %c0_41 = arith.constant 0 : index
    %c19_42 = arith.constant 19 : index
    %75 = vector.load %arg8[%c0_41, %c19_42] : memref<16x806xbf16, #tpu.memory_space<vmem>>, vector<16x768xbf16>
    tpu.vector_store %arg8[%c0_41, %c19_42], %74 {strides = array<i32>} : memref<16x806xbf16, #tpu.memory_space<vmem>>, vector<16x768xbf16>,
    %c0_43 = arith.constant 0 : index
    %c0_44 = arith.constant 0 : index
    %76 = vector.load %arg8[%c0_43, %c0_44] : memref<16x806xbf16, #tpu.memory_space<vmem>>, vector<16x768xbf16>
    %c0_45 = arith.constant 0 : index
    %c0_46 = arith.constant 0 : index
    %77 = vector.load %arg9[%c0_45, %c0_46] : memref<144x768xbf16, #tpu.memory_space<vmem>>, vector<16x768xbf16>
    tpu.vector_store %arg9[%c0_45, %c0_46], %76 {strides = array<i32>} : memref<144x768xbf16, #tpu.memory_space<vmem>>, vector<16x768xbf16>,
    %c0_47 = arith.constant 0 : index
    %c1_48 = arith.constant 1 : index
    %78 = vector.load %arg8[%c0_47, %c1_48] : memref<16x806xbf16, #tpu.memory_space<vmem>>, vector<16x768xbf16>
    %c16_49 = arith.constant 16 : index
    %c0_50 = arith.constant 0 : index
    %79 = vector.load %arg9[%c16_49, %c0_50] : memref<144x768xbf16, #tpu.memory_space<vmem>>, vector<16x768xbf16>
    tpu.vector_store %arg9[%c16_49, %c0_50], %78 {strides = array<i32>} : memref<144x768xbf16, #tpu.memory_space<vmem>>, vector<16x768xbf16>,
    %c0_51 = arith.constant 0 : index
    %c2_52 = arith.constant 2 : index
    %80 = vector.load %arg8[%c0_51, %c2_52] : memref<16x806xbf16, #tpu.memory_space<vmem>>, vector<16x768xbf16>
    %c32_53 = arith.constant 32 : index
    %c0_54 = arith.constant 0 : index
    %81 = vector.load %arg9[%c32_53, %c0_54] : memref<144x768xbf16, #tpu.memory_space<vmem>>, vector<16x768xbf16>
    tpu.vector_store %arg9[%c32_53, %c0_54], %80 {strides = array<i32>} : memref<144x768xbf16, #tpu.memory_space<vmem>>, vector<16x768xbf16>,
    %c0_55 = arith.constant 0 : index
    %c18_56 = arith.constant 18 : index
    %82 = vector.load %arg8[%c0_55, %c18_56] : memref<16x806xbf16, #tpu.memory_space<vmem>>, vector<16x768xbf16>
    %c48_57 = arith.constant 48 : index
    %c0_58 = arith.constant 0 : index
    %83 = vector.load %arg9[%c48_57, %c0_58] : memref<144x768xbf16, #tpu.memory_space<vmem>>, vector<16x768xbf16>
    tpu.vector_store %arg9[%c48_57, %c0_58], %82 {strides = array<i32>} : memref<144x768xbf16, #tpu.memory_space<vmem>>, vector<16x768xbf16>,
    %c0_59 = arith.constant 0 : index
    %c19_60 = arith.constant 19 : index
    %84 = vector.load %arg8[%c0_59, %c19_60] : memref<16x806xbf16, #tpu.memory_space<vmem>>, vector<16x768xbf16>
    %c64_61 = arith.constant 64 : index
    %c0_62 = arith.constant 0 : index
    %85 = vector.load %arg9[%c64_61, %c0_62] : memref<144x768xbf16, #tpu.memory_space<vmem>>, vector<16x768xbf16>
    tpu.vector_store %arg9[%c64_61, %c0_62], %84 {strides = array<i32>} : memref<144x768xbf16, #tpu.memory_space<vmem>>, vector<16x768xbf16>,
    %c0_63 = arith.constant 0 : index
    %c20_64 = arith.constant 20 : index
    %86 = vector.load %arg8[%c0_63, %c20_64] : memref<16x806xbf16, #tpu.memory_space<vmem>>, vector<16x768xbf16>
    %c80_65 = arith.constant 80 : index
    %c0_66 = arith.constant 0 : index
    %87 = vector.load %arg9[%c80_65, %c0_66] : memref<144x768xbf16, #tpu.memory_space<vmem>>, vector<16x768xbf16>
    tpu.vector_store %arg9[%c80_65, %c0_66], %86 {strides = array<i32>} : memref<144x768xbf16, #tpu.memory_space<vmem>>, vector<16x768xbf16>,
    %c0_67 = arith.constant 0 : index
    %c36_68 = arith.constant 36 : index
    %88 = vector.load %arg8[%c0_67, %c36_68] : memref<16x806xbf16, #tpu.memory_space<vmem>>, vector<16x768xbf16>
    %c96_69 = arith.constant 96 : index
    %c0_70 = arith.constant 0 : index
    %89 = vector.load %arg9[%c96_69, %c0_70] : memref<144x768xbf16, #tpu.memory_space<vmem>>, vector<16x768xbf16>
    tpu.vector_store %arg9[%c96_69, %c0_70], %88 {strides = array<i32>} : memref<144x768xbf16, #tpu.memory_space<vmem>>, vector<16x768xbf16>,
    %c0_71 = arith.constant 0 : index
    %c37_72 = arith.constant 37 : index
    %90 = vector.load %arg8[%c0_71, %c37_72] : memref<16x806xbf16, #tpu.memory_space<vmem>>, vector<16x768xbf16>
    %c112_73 = arith.constant 112 : index
    %c0_74 = arith.constant 0 : index
    %91 = vector.load %arg9[%c112_73, %c0_74] : memref<144x768xbf16, #tpu.memory_space<vmem>>, vector<16x768xbf16>
    tpu.vector_store %arg9[%c112_73, %c0_74], %90 {strides = array<i32>} : memref<144x768xbf16, #tpu.memory_space<vmem>>, vector<16x768xbf16>,
    %c0_75 = arith.constant 0 : index
    %c38_76 = arith.constant 38 : index
    %92 = vector.load %arg8[%c0_75, %c38_76] : memref<16x806xbf16, #tpu.memory_space<vmem>>, vector<16x768xbf16>
    %c128_77 = arith.constant 128 : index
    %c0_78 = arith.constant 0 : index
    %93 = vector.load %arg9[%c128_77, %c0_78] : memref<144x768xbf16, #tpu.memory_space<vmem>>, vector<16x768xbf16>
    tpu.vector_store %arg9[%c128_77, %c0_78], %92 {strides = array<i32>} : memref<144x768xbf16, #tpu.memory_space<vmem>>, vector<16x768xbf16>,
    %c0_79 = arith.constant 0 : index
    %c0_80 = arith.constant 0 : index
    %94 = vector.load %arg4[%c0_79, %c0_80] : memref<16x144xbf16, #tpu.memory_space<vmem>>, vector<16x144xbf16>
    %c0_81 = arith.constant 0 : index
    %c0_82 = arith.constant 0 : index
    %95 = vector.load %arg9[%c0_81, %c0_82] : memref<144x768xbf16, #tpu.memory_space<vmem>>, vector<144x768xbf16>
    %cst_83 = arith.constant dense<0.000000e+00> : vector<16x768xf32>
    %96 = tpu.matmul %94, %95, %cst_83 {dimension_numbers = #tpu.dot_dimension_numbers<[1], [0], [0], [1], [0, 0, 1, 1], [], []>} : vector<16x144xbf16>, vector<144x768xbf16>, vector<16x768xf32> -> vector<16x768xf32>
    %c0_84 = arith.constant 0 : index
    %c0_85 = arith.constant 0 : index
    %97 = vector.load %arg5[%c0_84, %c0_85] : memref<16x1xf32, #tpu.memory_space<vmem>>, vector<16x1xf32>
    %98 = vector.broadcast %97 : vector<16x1xf32> to vector<16x768xf32>
    %99 = arith.addf %96, %98 : vector<16x768xf32>
    %cst_86 = arith.constant 0.899999976 : f32
    %100 = vector.broadcast %cst_86 : f32 to vector<16x768xf32>
    %101 = arith.mulf %100, %27 : vector<16x768xf32>
    %102 = arith.addf %101, %99 : vector<16x768xf32>
    %cst_87 = arith.constant 1.000000e+00 : f32
    %103 = vector.broadcast %cst_87 : f32 to vector<16x768xf32>
    %104 = arith.mulf %31, %103 : vector<16x768xf32>
    %105 = arith.subf %102, %104 : vector<16x768xf32>
    %cst_88 = arith.constant 1.000000e+00 : f32
    %106 = vector.broadcast %cst_88 : f32 to vector<16x768xf32>
    %107 = arith.cmpf ogt, %105, %106 : vector<16x768xf32>
    %108 = arith.extui %107 : vector<16x768xi1> to vector<16x768xi32>
    %109 = arith.sitofp %108 : vector<16x768xi32> to vector<16x768xf32>
    %c0_89 = arith.constant 0 : index
    %c0_90 = arith.constant 0 : index
    %110 = vector.load %arg6[%c0_89, %c0_90] : memref<16x768xf32, #tpu.memory_space<vmem>>, vector<16x768xf32>
    tpu.vector_store %arg6[%c0_89, %c0_90], %109 {strides = array<i32>} : memref<16x768xf32, #tpu.memory_space<vmem>>, vector<16x768xf32>,
    %c0_91 = arith.constant 0 : index
    %c0_92 = arith.constant 0 : index
    %111 = vector.load %arg7[%c0_91, %c0_92] : memref<16x768xf32, #tpu.memory_space<vmem>>, vector<16x768xf32>
    tpu.vector_store %arg7[%c0_91, %c0_92], %105 {strides = array<i32>} : memref<16x768xf32, #tpu.memory_space<vmem>>, vector<16x768xf32>,
    return
  }
  func.func @transform_0(%arg0: i32) -> (i32, i32) {
    %c0_i32 = arith.constant 0 : i32
    %c0_i32_0 = arith.constant 0 : i32
    return %c0_i32, %arg0 : i32, i32
  }
  func.func @transform_1(%arg0: i32) -> (i32, i32) {
    %c0_i32 = arith.constant 0 : i32
    %c0_i32_0 = arith.constant 0 : i32
    %c0_i32_1 = arith.constant 0 : i32
    return %c0_i32, %c0_i32_0 : i32, i32
  }
  func.func @transform_2(%arg0: i32) -> (i32, i32) {
    %c0_i32 = arith.constant 0 : i32
    %c0_i32_0 = arith.constant 0 : i32
    %c0_i32_1 = arith.constant 0 : i32
    return %c0_i32, %c0_i32_0 : i32, i32
  }
  func.func @transform_3(%arg0: i32) -> (i32, i32) {
    %c0_i32 = arith.constant 0 : i32
    %c0_i32_0 = arith.constant 0 : i32
    %c0_i32_1 = arith.constant 0 : i32
    return %c0_i32, %c0_i32_0 : i32, i32
  }
  func.func @transform_4(%arg0: i32) -> (i32, i32) {
    %c0_i32 = arith.constant 0 : i32
    %c0_i32_0 = arith.constant 0 : i32
    %c0_i32_1 = arith.constant 0 : i32
    return %c0_i32, %c0_i32_0 : i32, i32
  }
  func.func @transform_5(%arg0: i32) -> (i32, i32) {
    %c0_i32 = arith.constant 0 : i32
    %c0_i32_0 = arith.constant 0 : i32
    return %c0_i32, %arg0 : i32, i32
  }
  func.func @transform_6(%arg0: i32) -> (i32, i32) {
    %c0_i32 = arith.constant 0 : i32
    %c0_i32_0 = arith.constant 0 : i32
    return %c0_i32, %arg0 : i32, i32
  }
}

</mosaic_0001>

<llo_original>
// kernel: snn_basic_block_forward.1
$region0: #{snn_basic_block_forward.1}
  #allocation0 [shape = 'u32[]', space=smem, size = 0x4, offset = 0x4, fixed_abs, tag = 'smem constant byte address 0x4 - core index']
  #allocation1 [shape = 'u32[144,128]{1,0:T(1,128)}', space=vmem, size = 0x12000, scoped, tag = 'internal scratch']
  #allocation2 [shape = 'bf16[16,806]{1,0:T(16,128)(2,1)}', space=vmem, size = 0x7000, scoped, tag = 'scratch operand']
  #allocation3 [shape = 'bf16[144,768]{1,0:T(16,128)(2,1)}', space=vmem, size = 0x36000, scoped, tag = 'scratch operand']
  %s0 = inlined_call_operand.vmem [shape: bf16[16,768], index: 0, kind: input, shape index: {}]
  %s1 = inlined_call_operand.vmem [shape: bf16[16,144], index: 1, kind: input, shape index: {}]
  %s2 = inlined_call_operand.vmem [shape: f32[16,1], index: 2, kind: input, shape index: {}]
  %s3 = inlined_call_operand.vmem [shape: bf16[16,144], index: 3, kind: input, shape index: {}]
  %s4 = inlined_call_operand.vmem [shape: f32[16,1], index: 4, kind: input, shape index: {}]
  %s5 = inlined_call_operand.vmem [shape: f32[16,768], index: 5, kind: output, shape index: {0}]
  %s6 = inlined_call_operand.vmem [shape: f32[16,768], index: 6, kind: output, shape index: {1}]
  %7 = xla_tuple %s5, %s6
  %s8 = sld [smem:[#allocation0]]
  $region38: #{snn_basic_block_forward.1} parent=0
    _
  %s10 = ssub.s32 1, %s8
  %s11 = scalar_select 0, %s10, %s8
  // Predicated region
  $region2: #{snn_basic_block_forward.1} parent=0 // pred_check
    _
  $region3: #{snn_basic_block_forward.1} parent=0 // pred_check_branch
    %13 = sbr.rel (0) target = $region5
  $region4: #{snn_basic_block_forward.1} parent=0 // pred_region
    _
  $region5: #{snn_basic_block_forward.1} parent=0 // pred_fallthru
    _
  // Predicated region
  $region6: #{snn_basic_block_forward.1} parent=0 // pred_check
    _
  $region7: #{snn_basic_block_forward.1} parent=0 // pred_check_branch
    %15 = sbr.rel (0) target = $region9
  $region8: #{snn_basic_block_forward.1} parent=0 // pred_region
    _
  $region9: #{snn_basic_block_forward.1} parent=0 // pred_fallthru
    _
  // Predicated region
  $region10: #{snn_basic_block_forward.1} parent=0 // pred_check
    _
  $region11: #{snn_basic_block_forward.1} parent=0 // pred_check_branch
    %17 = sbr.rel (0) target = $region13
  $region12: #{snn_basic_block_forward.1} parent=0 // pred_region
    _
  $region13: #{snn_basic_block_forward.1} parent=0 // pred_fallthru
    _
  // Predicated region
  $region14: #{snn_basic_block_forward.1} parent=0 // pred_check
    _
  $region15: #{snn_basic_block_forward.1} parent=0 // pred_check_branch
    %19 = sbr.rel (0) target = $region17
  $region16: #{snn_basic_block_forward.1} parent=0 // pred_region
    _
  $region17: #{snn_basic_block_forward.1} parent=0 // pred_fallthru
    _
  // Predicated region
  $region18: #{snn_basic_block_forward.1} parent=0 // pred_check
    _
  $region19: #{snn_basic_block_forward.1} parent=0 // pred_check_branch
    %21 = sbr.rel (0) target = $region21
  $region20: #{snn_basic_block_forward.1} parent=0 // pred_region
    _
  $region21: #{snn_basic_block_forward.1} parent=0 // pred_fallthru
    _
  %vm23 = vcmask 310272
  %24 = vst.msk [vmem:[#allocation2 + $0x30] sm:$0xff] %vm23, 0
  %v25 = vld [vmem:[%s0] sm:$0xff]
  %v26 = vld [vmem:[%s0 + $0x8] sm:$0xff]
  %v27 = vld [vmem:[%s0 + $0x10] sm:$0xff]
  %v28 = vld [vmem:[%s0 + $0x18] sm:$0xff]
  %v29 = vld [vmem:[%s0 + $0x20] sm:$0xff]
  %v30 = vld [vmem:[%s0 + $0x28] sm:$0xff]
  %v37 = vunpack.c.l.b16 %v25
  %v38 = vunpack.c.h.b16 %v25
  %v39 = vunpack.c.l.b16 %v26
  %v40 = vunpack.c.h.b16 %v26
  %v41 = vunpack.c.l.b16 %v27
  %v42 = vunpack.c.h.b16 %v27
  %v43 = vunpack.c.l.b16 %v28
  %v44 = vunpack.c.h.b16 %v28
  %v45 = vunpack.c.l.b16 %v29
  %v46 = vunpack.c.h.b16 %v29
  %v47 = vunpack.c.l.b16 %v30
  %v48 = vunpack.c.h.b16 %v30
  %v49 = vpack.c.b16 %v43, %v37
  %v50 = vpack.c.b16 %v44, %v38
  %v51 = vpack.c.b16 %v45, %v39
  %v52 = vpack.c.b16 %v46, %v40
  %v53 = vpack.c.b16 %v47, %v41
  %v54 = vpack.c.b16 %v48, %v42
  %61 = vst [vmem:[#allocation2] sm:$0xff] %v49
  %62 = vst [vmem:[#allocation2 + $0x8] sm:$0xff] %v50
  %63 = vst [vmem:[#allocation2 + $0x10] sm:$0xff] %v51
  %64 = vst [vmem:[#allocation2 + $0x18] sm:$0xff] %v52
  %65 = vst [vmem:[#allocation2 + $0x20] sm:$0xff] %v53
  %66 = vst [vmem:[#allocation2 + $0x28] sm:$0xff] %v54
  %v67 = vld [vmem:[#allocation2] sm:$0xff]
  %v68 = vld [vmem:[#allocation2 + $0x8] sm:$0xff]
  %v69 = vld [vmem:[#allocation2 + $0x10] sm:$0xff]
  %v70 = vld [vmem:[#allocation2 + $0x18] sm:$0xff]
  %v71 = vld [vmem:[#allocation2 + $0x20] sm:$0xff]
  %v72 = vld [vmem:[#allocation2 + $0x28] sm:$0xff]
  %73 = vst [vmem:[#allocation3] sm:$0xff] %v67
  %74 = vst [vmem:[#allocation3 + $0x8] sm:$0xff] %v68
  %75 = vst [vmem:[#allocation3 + $0x10] sm:$0xff] %v69
  %76 = vst [vmem:[#allocation3 + $0x18] sm:$0xff] %v70
  %77 = vst [vmem:[#allocation3 + $0x20] sm:$0xff] %v71
  %78 = vst [vmem:[#allocation3 + $0x28] sm:$0xff] %v72
  %v79 = vld [vmem:[#allocation2] sm:$0xff]
  %v80 = vld [vmem:[#allocation2 + $0x8] sm:$0xff]
  %v81 = vld [vmem:[#allocation2 + $0x10] sm:$0xff]
  %v82 = vld [vmem:[#allocation2 + $0x18] sm:$0xff]
  %v83 = vld [vmem:[#allocation2 + $0x20] sm:$0xff]
  %v84 = vld [vmem:[#allocation2 + $0x28] sm:$0xff]
  %v85 = vld [vmem:[#allocation2 + $0x30] sm:$0xff]
  %93 = vrot.lane.b32.xlu0 %v79, 127
  %v94 = vpop.permute.xlu0 %93
  %95 = vrot.lane.b32.xlu0 %v80, 127
  %v96 = vpop.permute.xlu0 %95
  %97 = vrot.lane.b32.xlu0 %v81, 127
  %v98 = vpop.permute.xlu0 %97
  %99 = vrot.lane.b32.xlu0 %v82, 127
  %v100 = vpop.permute.xlu0 %99
  %101 = vrot.lane.b32.xlu0 %v83, 127
  %v102 = vpop.permute.xlu0 %101
  %103 = vrot.lane.b32.xlu0 %v84, 127
  %v104 = vpop.permute.xlu0 %103
  %105 = vrot.lane.b32.xlu0 %v85, 127
  %v106 = vpop.permute.xlu0 %105
  %vm107 = vcmask 1039360
  %v108 = vsel %vm107, %v94, %v96
  %v109 = vsel %vm107, %v96, %v98
  %v110 = vsel %vm107, %v98, %v100
  %v111 = vsel %vm107, %v100, %v102
  %v112 = vsel %vm107, %v102, %v104
  %v113 = vsel %vm107, %v104, %v106
  %120 = vst [vmem:[#allocation3 + $0x30] sm:$0xff] %v108
  %121 = vst [vmem:[#allocation3 + $0x38] sm:$0xff] %v109
  %122 = vst [vmem:[#allocation3 + $0x40] sm:$0xff] %v110
  %123 = vst [vmem:[#allocation3 + $0x48] sm:$0xff] %v111
  %124 = vst [vmem:[#allocation3 + $0x50] sm:$0xff] %v112
  %125 = vst [vmem:[#allocation3 + $0x58] sm:$0xff] %v113
  %v126 = vld [vmem:[#allocation2] sm:$0xff]
  %v127 = vld [vmem:[#allocation2 + $0x8] sm:$0xff]
  %v128 = vld [vmem:[#allocation2 + $0x10] sm:$0xff]
  %v129 = vld [vmem:[#allocation2 + $0x18] sm:$0xff]
  %v130 = vld [vmem:[#allocation2 + $0x20] sm:$0xff]
  %v131 = vld [vmem:[#allocation2 + $0x28] sm:$0xff]
  %v132 = vld [vmem:[#allocation2 + $0x30] sm:$0xff]
  %140 = vrot.lane.b32.xlu0 %v126, 126
  %v141 = vpop.permute.xlu0 %140
  %142 = vrot.lane.b32.xlu0 %v127, 126
  %v143 = vpop.permute.xlu0 %142
  %144 = vrot.lane.b32.xlu0 %v128, 126
  %v145 = vpop.permute.xlu0 %144
  %146 = vrot.lane.b32.xlu0 %v129, 126
  %v147 = vpop.permute.xlu0 %146
  %148 = vrot.lane.b32.xlu0 %v130, 126
  %v149 = vpop.permute.xlu0 %148
  %150 = vrot.lane.b32.xlu0 %v131, 126
  %v151 = vpop.permute.xlu0 %150
  %152 = vrot.lane.b32.xlu0 %v132, 126
  %v153 = vpop.permute.xlu0 %152
  %vm154 = vcmask 1031168
  %v155 = vsel %vm154, %v141, %v143
  %v156 = vsel %vm154, %v143, %v145
  %v157 = vsel %vm154, %v145, %v147
  %v158 = vsel %vm154, %v147, %v149
  %v159 = vsel %vm154, %v149, %v151
  %v160 = vsel %vm154, %v151, %v153
  %167 = vst [vmem:[#allocation3 + $0x60] sm:$0xff] %v155
  %168 = vst [vmem:[#allocation3 + $0x68] sm:$0xff] %v156
  %169 = vst [vmem:[#allocation3 + $0x70] sm:$0xff] %v157
  %170 = vst [vmem:[#allocation3 + $0x78] sm:$0xff] %v158
  %171 = vst [vmem:[#allocation3 + $0x80] sm:$0xff] %v159
  %172 = vst [vmem:[#allocation3 + $0x88] sm:$0xff] %v160
  %v173 = vld [vmem:[#allocation2] sm:$0xff]
  %v174 = vld [vmem:[#allocation2 + $0x8] sm:$0xff]
  %v175 = vld [vmem:[#allocation2 + $0x10] sm:$0xff]
  %v176 = vld [vmem:[#allocation2 + $0x18] sm:$0xff]
  %v177 = vld [vmem:[#allocation2 + $0x20] sm:$0xff]
  %v178 = vld [vmem:[#allocation2 + $0x28] sm:$0xff]
  %v179 = vld [vmem:[#allocation2 + $0x30] sm:$0xff]
  %187 = vrot.lane.b32.xlu0 %v173, 110
  %v188 = vpop.permute.xlu0 %187
  %189 = vrot.lane.b32.xlu0 %v174, 110
  %v190 = vpop.permute.xlu0 %189
  %191 = vrot.lane.b32.xlu0 %v175, 110
  %v192 = vpop.permute.xlu0 %191
  %193 = vrot.lane.b32.xlu0 %v176, 110
  %v194 = vpop.permute.xlu0 %193
  %195 = vrot.lane.b32.xlu0 %v177, 110
  %v196 = vpop.permute.xlu0 %195
  %197 = vrot.lane.b32.xlu0 %v178, 110
  %v198 = vpop.permute.xlu0 %197
  %199 = vrot.lane.b32.xlu0 %v179, 110
  %v200 = vpop.permute.xlu0 %199
  %vm201 = vcmask 900096
  %v202 = vsel %vm201, %v188, %v190
  %v203 = vsel %vm201, %v190, %v192
  %v204 = vsel %vm201, %v192, %v194
  %v205 = vsel %vm201, %v194, %v196
  %v206 = vsel %vm201, %v196, %v198
  %v207 = vsel %vm201, %v198, %v200
  %214 = vst [vmem:[#allocation3 + $0x90] sm:$0xff] %v202
  %215 = vst [vmem:[#allocation3 + $0x98] sm:$0xff] %v203
  %216 = vst [vmem:[#allocation3 + $0xa0] sm:$0xff] %v204
  %217 = vst [vmem:[#allocation3 + $0xa8] sm:$0xff] %v205
  %218 = vst [vmem:[#allocation3 + $0xb0] sm:$0xff] %v206
  %219 = vst [vmem:[#allocation3 + $0xb8] sm:$0xff] %v207
  %v220 = vld [vmem:[#allocation2] sm:$0xff]
  %v221 = vld [vmem:[#allocation2 + $0x8] sm:$0xff]
  %v222 = vld [vmem:[#allocation2 + $0x10] sm:$0xff]
  %v223 = vld [vmem:[#allocation2 + $0x18] sm:$0xff]
  %v224 = vld [vmem:[#allocation2 + $0x20] sm:$0xff]
  %v225 = vld [vmem:[#allocation2 + $0x28] sm:$0xff]
  %v226 = vld [vmem:[#allocation2 + $0x30] sm:$0xff]
  %234 = vrot.lane.b32.xlu0 %v220, 109
  %v235 = vpop.permute.xlu0 %234
  %236 = vrot.lane.b32.xlu0 %v221, 109
  %v237 = vpop.permute.xlu0 %236
  %238 = vrot.lane.b32.xlu0 %v222, 109
  %v239 = vpop.permute.xlu0 %238
  %240 = vrot.lane.b32.xlu0 %v223, 109
  %v241 = vpop.permute.xlu0 %240
  %242 = vrot.lane.b32.xlu0 %v224, 109
  %v243 = vpop.permute.xlu0 %242
  %244 = vrot.lane.b32.xlu0 %v225, 109
  %v245 = vpop.permute.xlu0 %244
  %246 = vrot.lane.b32.xlu0 %v226, 109
  %v247 = vpop.permute.xlu0 %246
  %vm248 = vcmask 891904
  %v249 = vsel %vm248, %v235, %v237
  %v250 = vsel %vm248, %v237, %v239
  %v251 = vsel %vm248, %v239, %v241
  %v252 = vsel %vm248, %v241, %v243
  %v253 = vsel %vm248, %v243, %v245
  %v254 = vsel %vm248, %v245, %v247
  %261 = vst [vmem:[#allocation3 + $0xc0] sm:$0xff] %v249
  %262 = vst [vmem:[#allocation3 + $0xc8] sm:$0xff] %v250
  %263 = vst [vmem:[#allocation3 + $0xd0] sm:$0xff] %v251
  %264 = vst [vmem:[#allocation3 + $0xd8] sm:$0xff] %v252
  %265 = vst [vmem:[#allocation3 + $0xe0] sm:$0xff] %v253
  %266 = vst [vmem:[#allocation3 + $0xe8] sm:$0xff] %v254
  %v267 = vld [vmem:[#allocation2] sm:$0xff]
  %v268 = vld [vmem:[#allocation2 + $0x8] sm:$0xff]
  %v269 = vld [vmem:[#allocation2 + $0x10] sm:$0xff]
  %v270 = vld [vmem:[#allocation2 + $0x18] sm:$0xff]
  %v271 = vld [vmem:[#allocation2 + $0x20] sm:$0xff]
  %v272 = vld [vmem:[#allocation2 + $0x28] sm:$0xff]
  %v273 = vld [vmem:[#allocation2 + $0x30] sm:$0xff]
  %281 = vrot.lane.b32.xlu0 %v267, 108
  %v282 = vpop.permute.xlu0 %281
  %283 = vrot.lane.b32.xlu0 %v268, 108
  %v284 = vpop.permute.xlu0 %283
  %285 = vrot.lane.b32.xlu0 %v269, 108
  %v286 = vpop.permute.xlu0 %285
  %287 = vrot.lane.b32.xlu0 %v270, 108
  %v288 = vpop.permute.xlu0 %287
  %289 = vrot.lane.b32.xlu0 %v271, 108
  %v290 = vpop.permute.xlu0 %289
  %291 = vrot.lane.b32.xlu0 %v272, 108
  %v292 = vpop.permute.xlu0 %291
  %293 = vrot.lane.b32.xlu0 %v273, 108
  %v294 = vpop.permute.xlu0 %293
  %vm295 = vcmask 883712
  %v296 = vsel %vm295, %v282, %v284
  %v297 = vsel %vm295, %v284, %v286
  %v298 = vsel %vm295, %v286, %v288
  %v299 = vsel %vm295, %v288, %v290
  %v300 = vsel %vm295, %v290, %v292
  %v301 = vsel %vm295, %v292, %v294
  %308 = vst [vmem:[#allocation3 + $0xf0] sm:$0xff] %v296
  %309 = vst [vmem:[#allocation3 + $0xf8] sm:$0xff] %v297
  %310 = vst [vmem:[#allocation3 + $0x100] sm:$0xff] %v298
  %311 = vst [vmem:[#allocation3 + $0x108] sm:$0xff] %v299
  %312 = vst [vmem:[#allocation3 + $0x110] sm:$0xff] %v300
  %313 = vst [vmem:[#allocation3 + $0x118] sm:$0xff] %v301
  %v314 = vld [vmem:[#allocation2] sm:$0xff]
  %v315 = vld [vmem:[#allocation2 + $0x8] sm:$0xff]
  %v316 = vld [vmem:[#allocation2 + $0x10] sm:$0xff]
  %v317 = vld [vmem:[#allocation2 + $0x18] sm:$0xff]
  %v318 = vld [vmem:[#allocation2 + $0x20] sm:$0xff]
  %v319 = vld [vmem:[#allocation2 + $0x28] sm:$0xff]
  %v320 = vld [vmem:[#allocation2 + $0x30] sm:$0xff]
  %328 = vrot.lane.b32.xlu0 %v314, 92
  %v329 = vpop.permute.xlu0 %328
  %330 = vrot.lane.b32.xlu0 %v315, 92
  %v331 = vpop.permute.xlu0 %330
  %332 = vrot.lane.b32.xlu0 %v316, 92
  %v333 = vpop.permute.xlu0 %332
  %334 = vrot.lane.b32.xlu0 %v317, 92
  %v335 = vpop.permute.xlu0 %334
  %336 = vrot.lane.b32.xlu0 %v318, 92
  %v337 = vpop.permute.xlu0 %336
  %338 = vrot.lane.b32.xlu0 %v319, 92
  %v339 = vpop.permute.xlu0 %338
  %340 = vrot.lane.b32.xlu0 %v320, 92
  %v341 = vpop.permute.xlu0 %340
  %vm342 = vcmask 752640
  %v343 = vsel %vm342, %v329, %v331
  %v344 = vsel %vm342, %v331, %v333
  %v345 = vsel %vm342, %v333, %v335
  %v346 = vsel %vm342, %v335, %v337
  %v347 = vsel %vm342, %v337, %v339
  %v348 = vsel %vm342, %v339, %v341
  %355 = vst [vmem:[#allocation3 + $0x120] sm:$0xff] %v343
  %356 = vst [vmem:[#allocation3 + $0x128] sm:$0xff] %v344
  %357 = vst [vmem:[#allocation3 + $0x130] sm:$0xff] %v345
  %358 = vst [vmem:[#allocation3 + $0x138] sm:$0xff] %v346
  %359 = vst [vmem:[#allocation3 + $0x140] sm:$0xff] %v347
  %360 = vst [vmem:[#allocation3 + $0x148] sm:$0xff] %v348
  %v361 = vld [vmem:[#allocation2] sm:$0xff]
  %v362 = vld [vmem:[#allocation2 + $0x8] sm:$0xff]
  %v363 = vld [vmem:[#allocation2 + $0x10] sm:$0xff]
  %v364 = vld [vmem:[#allocation2 + $0x18] sm:$0xff]
  %v365 = vld [vmem:[#allocation2 + $0x20] sm:$0xff]
  %v366 = vld [vmem:[#allocation2 + $0x28] sm:$0xff]
  %v367 = vld [vmem:[#allocation2 + $0x30] sm:$0xff]
  %375 = vrot.lane.b32.xlu0 %v361, 91
  %v376 = vpop.permute.xlu0 %375
  %377 = vrot.lane.b32.xlu0 %v362, 91
  %v378 = vpop.permute.xlu0 %377
  %379 = vrot.lane.b32.xlu0 %v363, 91
  %v380 = vpop.permute.xlu0 %379
  %381 = vrot.lane.b32.xlu0 %v364, 91
  %v382 = vpop.permute.xlu0 %381
  %383 = vrot.lane.b32.xlu0 %v365, 91
  %v384 = vpop.permute.xlu0 %383
  %385 = vrot.lane.b32.xlu0 %v366, 91
  %v386 = vpop.permute.xlu0 %385
  %387 = vrot.lane.b32.xlu0 %v367, 91
  %v388 = vpop.permute.xlu0 %387
  %vm389 = vcmask 744448
  %v390 = vsel %vm389, %v376, %v378
  %v391 = vsel %vm389, %v378, %v380
  %v392 = vsel %vm389, %v380, %v382
  %v393 = vsel %vm389, %v382, %v384
  %v394 = vsel %vm389, %v384, %v386
  %v395 = vsel %vm389, %v386, %v388
  %402 = vst [vmem:[#allocation3 + $0x150] sm:$0xff] %v390
  %403 = vst [vmem:[#allocation3 + $0x158] sm:$0xff] %v391
  %404 = vst [vmem:[#allocation3 + $0x160] sm:$0xff] %v392
  %405 = vst [vmem:[#allocation3 + $0x168] sm:$0xff] %v393
  %406 = vst [vmem:[#allocation3 + $0x170] sm:$0xff] %v394
  %407 = vst [vmem:[#allocation3 + $0x178] sm:$0xff] %v395
  %v408 = vld [vmem:[#allocation2] sm:$0xff]
  %v409 = vld [vmem:[#allocation2 + $0x8] sm:$0xff]
  %v410 = vld [vmem:[#allocation2 + $0x10] sm:$0xff]
  %v411 = vld [vmem:[#allocation2 + $0x18] sm:$0xff]
  %v412 = vld [vmem:[#allocation2 + $0x20] sm:$0xff]
  %v413 = vld [vmem:[#allocation2 + $0x28] sm:$0xff]
  %v414 = vld [vmem:[#allocation2 + $0x30] sm:$0xff]
  %422 = vrot.lane.b32.xlu0 %v408, 90
  %v423 = vpop.permute.xlu0 %422
  %424 = vrot.lane.b32.xlu0 %v409, 90
  %v425 = vpop.permute.xlu0 %424
  %426 = vrot.lane.b32.xlu0 %v410, 90
  %v427 = vpop.permute.xlu0 %426
  %428 = vrot.lane.b32.xlu0 %v411, 90
  %v429 = vpop.permute.xlu0 %428
  %430 = vrot.lane.b32.xlu0 %v412, 90
  %v431 = vpop.permute.xlu0 %430
  %432 = vrot.lane.b32.xlu0 %v413, 90
  %v433 = vpop.permute.xlu0 %432
  %434 = vrot.lane.b32.xlu0 %v414, 90
  %v435 = vpop.permute.xlu0 %434
  %vm436 = vcmask 736256
  %v437 = vsel %vm436, %v423, %v425
  %v438 = vsel %vm436, %v425, %v427
  %v439 = vsel %vm436, %v427, %v429
  %v440 = vsel %vm436, %v429, %v431
  %v441 = vsel %vm436, %v431, %v433
  %v442 = vsel %vm436, %v433, %v435
  %449 = vst [vmem:[#allocation3 + $0x180] sm:$0xff] %v437
  %450 = vst [vmem:[#allocation3 + $0x188] sm:$0xff] %v438
  %451 = vst [vmem:[#allocation3 + $0x190] sm:$0xff] %v439
  %452 = vst [vmem:[#allocation3 + $0x198] sm:$0xff] %v440
  %453 = vst [vmem:[#allocation3 + $0x1a0] sm:$0xff] %v441
  %454 = vst [vmem:[#allocation3 + $0x1a8] sm:$0xff] %v442
  %v455 = vld [vmem:[%s1] sm:$0xff]
  %v456 = vld [vmem:[%s1 + $0x8] sm:$0xff]
  %v457 = vld [vmem:[#allocation3] sm:$0xff]
  %v458 = vld [vmem:[#allocation3 + $0x8] sm:$0xff]
  %v459 = vld [vmem:[#allocation3 + $0x10] sm:$0xff]
  %v460 = vld [vmem:[#allocation3 + $0x18] sm:$0xff]
  %v461 = vld [vmem:[#allocation3 + $0x20] sm:$0xff]
  %v462 = vld [vmem:[#allocation3 + $0x28] sm:$0xff]
  %v463 = vld [vmem:[#allocation3 + $0x30] sm:$0xff]
  %v464 = vld [vmem:[#allocation3 + $0x38] sm:$0xff]
  %v465 = vld [vmem:[#allocation3 + $0x40] sm:$0xff]
  %v466 = vld [vmem:[#allocation3 + $0x48] sm:$0xff]
  %v467 = vld [vmem:[#allocation3 + $0x50] sm:$0xff]
  %v468 = vld [vmem:[#allocation3 + $0x58] sm:$0xff]
  %v469 = vld [vmem:[#allocation3 + $0x60] sm:$0xff]
  %v470 = vld [vmem:[#allocation3 + $0x68] sm:$0xff]
  %v471 = vld [vmem:[#allocation3 + $0x70] sm:$0xff]
  %v472 = vld [vmem:[#allocation3 + $0x78] sm:$0xff]
  %v473 = vld [vmem:[#allocation3 + $0x80] sm:$0xff]
  %v474 = vld [vmem:[#allocation3 + $0x88] sm:$0xff]
  %v475 = vld [vmem:[#allocation3 + $0x90] sm:$0xff]
  %v476 = vld [vmem:[#allocation3 + $0x98] sm:$0xff]
  %v477 = vld [vmem:[#allocation3 + $0xa0] sm:$0xff]
  %v478 = vld [vmem:[#allocation3 + $0xa8] sm:$0xff]
  %v479 = vld [vmem:[#allocation3 + $0xb0] sm:$0xff]
  %v480 = vld [vmem:[#allocation3 + $0xb8] sm:$0xff]
  %v481 = vld [vmem:[#allocation3 + $0xc0] sm:$0xff]
  %v482 = vld [vmem:[#allocation3 + $0xc8] sm:$0xff]
  %v483 = vld [vmem:[#allocation3 + $0xd0] sm:$0xff]
  %v484 = vld [vmem:[#allocation3 + $0xd8] sm:$0xff]
  %v485 = vld [vmem:[#allocation3 + $0xe0] sm:$0xff]
  %v486 = vld [vmem:[#allocation3 + $0xe8] sm:$0xff]
  %v487 = vld [vmem:[#allocation3 + $0xf0] sm:$0xff]
  %v488 = vld [vmem:[#allocation3 + $0xf8] sm:$0xff]
  %v489 = vld [vmem:[#allocation3 + $0x100] sm:$0xff]
  %v490 = vld [vmem:[#allocation3 + $0x108] sm:$0xff]
  %v491 = vld [vmem:[#allocation3 + $0x110] sm:$0xff]
  %v492 = vld [vmem:[#allocation3 + $0x118] sm:$0xff]
  %v493 = vld [vmem:[#allocation3 + $0x120] sm:$0xff]
  %v494 = vld [vmem:[#allocation3 + $0x128] sm:$0xff]
  %v495 = vld [vmem:[#allocation3 + $0x130] sm:$0xff]
  %v496 = vld [vmem:[#allocation3 + $0x138] sm:$0xff]
  %v497 = vld [vmem:[#allocation3 + $0x140] sm:$0xff]
  %v498 = vld [vmem:[#allocation3 + $0x148] sm:$0xff]
  %v499 = vld [vmem:[#allocation3 + $0x150] sm:$0xff]
  %v500 = vld [vmem:[#allocation3 + $0x158] sm:$0xff]
  %v501 = vld [vmem:[#allocation3 + $0x160] sm:$0xff]
  %v502 = vld [vmem:[#allocation3 + $0x168] sm:$0xff]
  %v503 = vld [vmem:[#allocation3 + $0x170] sm:$0xff]
  %v504 = vld [vmem:[#allocation3 + $0x178] sm:$0xff]
  %v505 = vld [vmem:[#allocation3 + $0x180] sm:$0xff]
  %v506 = vld [vmem:[#allocation3 + $0x188] sm:$0xff]
  %v507 = vld [vmem:[#allocation3 + $0x190] sm:$0xff]
  %v508 = vld [vmem:[#allocation3 + $0x198] sm:$0xff]
  %v509 = vld [vmem:[#allocation3 + $0x1a0] sm:$0xff]
  %v510 = vld [vmem:[#allocation3 + $0x1a8] sm:$0xff]
  %v511 = vld [vmem:[%s2] sm:$0xff]
  %v512 = vld [vmem:[%s2 + $0x8] sm:$0xff]
  %514 = vset.pattern.permute.xlu0 0
  %515 = vperm.xlu0 %514, %v511
  %v516 = vpop.permute.xlu0 %515
  %519 = vset.pattern.permute.xlu0 0
  %520 = vperm.xlu0 %519, %v512
  %v521 = vpop.permute.xlu0 %520
  %v525 = vunpack.c.l.b16 %v455
  %v526 = vunpack.c.h.b16 %v455
  %v527 = vunpack.c.l.b16 %v456
  %v528 = vunpack.c.h.b16 %v456
  %v529 = vpack.c.b16 %v527, %v525
  %v530 = vpack.c.b16 %v528, %v526
  %vm532 = vcmask 130048
  %v534 = vsel %vm532, %v530, 0
  %536 = vmatprep.subr.bf16.mxu0 %v458
  %537 = vmatpush1.bf16.msra.mxu0 %v457
  %538 = vmatprep.subr.bf16.mxu0 %v464
  %539 = vmatpush1.bf16.msra.mxu0 %v463
  %540 = vmatprep.subr.bf16.mxu0 %v470
  %541 = vmatpush1.bf16.msra.mxu0 %v469
  %542 = vmatprep.subr.bf16.mxu0 %v476
  %543 = vmatpush1.bf16.msra.mxu0 %v475
  %544 = vmatprep.subr.bf16.mxu0 %v482
  %545 = vmatpush1.bf16.msra.mxu0 %v481
  %546 = vmatprep.subr.bf16.mxu0 %v488
  %547 = vmatpush1.bf16.msra.mxu0 %v487
  %548 = vmatprep.subr.bf16.mxu0 %v494
  %549 = vmatpush1.bf16.msra.mxu0 %v493
  %550 = vmatprep.subr.bf16.mxu0 %v500
  %551 = vmatpush1.bf16.msra.mxu0 %v499
  %552 = vmatprep.subr.bf16.mxu0 %v506
  %553 = vmatpush1.bf16.msra.mxu0 %v505
  %554 = vmatprep.subr.bf16.mxu0 0
  %555 = vmatpush1.bf16.msra.mxu0 0
  %556 = vmatprep.subr.bf16.mxu0 0
  %557 = vmatpush1.bf16.msra.mxu0 0
  %558 = vmatprep.subr.bf16.mxu0 0
  %559 = vmatpush1.bf16.msra.mxu0 0
  %560 = vmatprep.subr.bf16.mxu0 0
  %561 = vmatpush1.bf16.msra.mxu0 0
  %562 = vmatprep.subr.bf16.mxu0 0
  %563 = vmatpush1.bf16.msra.mxu0 0
  %564 = vmatprep.subr.bf16.mxu0 0
  %565 = vmatpush1.bf16.msra.mxu0 0
  %566 = vmatprep.subr.bf16.mxu0 0
  %567 = vmatpush1.bf16.msra.mxu0 0
  %568 = vmatprep.mubr.bf16.mxu0 %v534
  %569 = vmatmul.mubr.bf16.gmra.mrb[0].mxu0 %v529
  %v570 = vpop.f32.mrb[0].mxu0
  %v571 = vadd.f32 %v516, %v570
  %v572 = vpop.f32.mrb[0].mxu0
  %v573 = vadd.f32 %v516, %v572
  %v574 = vpop.f32.mrb[0].mxu0
  %v575 = vadd.f32 %v521, %v574
  %v576 = vpop.f32.mrb[0].mxu0
  %v577 = vadd.f32 %v521, %v576
  %578 = vdwg.mxu0
  %579 = vmatprep.subr.bf16.mxu0 %v460
  %580 = vmatpush1.bf16.msra.mxu0 %v459
  %581 = vmatprep.subr.bf16.mxu0 %v466
  %582 = vmatpush1.bf16.msra.mxu0 %v465
  %583 = vmatprep.subr.bf16.mxu0 %v472
  %584 = vmatpush1.bf16.msra.mxu0 %v471
  %585 = vmatprep.subr.bf16.mxu0 %v478
  %586 = vmatpush1.bf16.msra.mxu0 %v477
  %587 = vmatprep.subr.bf16.mxu0 %v484
  %588 = vmatpush1.bf16.msra.mxu0 %v483
  %589 = vmatprep.subr.bf16.mxu0 %v490
  %590 = vmatpush1.bf16.msra.mxu0 %v489
  %591 = vmatprep.subr.bf16.mxu0 %v496
  %592 = vmatpush1.bf16.msra.mxu0 %v495
  %593 = vmatprep.subr.bf16.mxu0 %v502
  %594 = vmatpush1.bf16.msra.mxu0 %v501
  %595 = vmatprep.subr.bf16.mxu0 %v508
  %596 = vmatpush1.bf16.msra.mxu0 %v507
  %597 = vmatprep.subr.bf16.mxu0 0
  %598 = vmatpush1.bf16.msra.mxu0 0
  %599 = vmatprep.subr.bf16.mxu0 0
  %600 = vmatpush1.bf16.msra.mxu0 0
  %601 = vmatprep.subr.bf16.mxu0 0
  %602 = vmatpush1.bf16.msra.mxu0 0
  %603 = vmatprep.subr.bf16.mxu0 0
  %604 = vmatpush1.bf16.msra.mxu0 0
  %605 = vmatprep.subr.bf16.mxu0 0
  %606 = vmatpush1.bf16.msra.mxu0 0
  %607 = vmatprep.subr.bf16.mxu0 0
  %608 = vmatpush1.bf16.msra.mxu0 0
  %609 = vmatprep.subr.bf16.mxu0 0
  %610 = vmatpush1.bf16.msra.mxu0 0
  %611 = vmatprep.mubr.bf16.mxu0 %v534
  %612 = vmatmul.mubr.bf16.gmra.mrb[0].mxu0 %v529
  %v613 = vpop.f32.mrb[0].mxu0
  %v614 = vadd.f32 %v516, %v613
  %v615 = vpop.f32.mrb[0].mxu0
  %v616 = vadd.f32 %v516, %v615
  %v617 = vpop.f32.mrb[0].mxu0
  %v618 = vadd.f32 %v521, %v617
  %v619 = vpop.f32.mrb[0].mxu0
  %v620 = vadd.f32 %v521, %v619
  %621 = vdwg.mxu0
  %622 = vmatprep.subr.bf16.mxu0 %v462
  %623 = vmatpush1.bf16.msra.mxu0 %v461
  %624 = vmatprep.subr.bf16.mxu0 %v468
  %625 = vmatpush1.bf16.msra.mxu0 %v467
  %626 = vmatprep.subr.bf16.mxu0 %v474
  %627 = vmatpush1.bf16.msra.mxu0 %v473
  %628 = vmatprep.subr.bf16.mxu0 %v480
  %629 = vmatpush1.bf16.msra.mxu0 %v479
  %630 = vmatprep.subr.bf16.mxu0 %v486
  %631 = vmatpush1.bf16.msra.mxu0 %v485
  %632 = vmatprep.subr.bf16.mxu0 %v492
  %633 = vmatpush1.bf16.msra.mxu0 %v491
  %634 = vmatprep.subr.bf16.mxu0 %v498
  %635 = vmatpush1.bf16.msra.mxu0 %v497
  %636 = vmatprep.subr.bf16.mxu0 %v504
  %637 = vmatpush1.bf16.msra.mxu0 %v503
  %638 = vmatprep.subr.bf16.mxu0 %v510
  %639 = vmatpush1.bf16.msra.mxu0 %v509
  %640 = vmatprep.subr.bf16.mxu0 0
  %641 = vmatpush1.bf16.msra.mxu0 0
  %642 = vmatprep.subr.bf16.mxu0 0
  %643 = vmatpush1.bf16.msra.mxu0 0
  %644 = vmatprep.subr.bf16.mxu0 0
  %645 = vmatpush1.bf16.msra.mxu0 0
  %646 = vmatprep.subr.bf16.mxu0 0
  %647 = vmatpush1.bf16.msra.mxu0 0
  %648 = vmatprep.subr.bf16.mxu0 0
  %649 = vmatpush1.bf16.msra.mxu0 0
  %650 = vmatprep.subr.bf16.mxu0 0
  %651 = vmatpush1.bf16.msra.mxu0 0
  %652 = vmatprep.subr.bf16.mxu0 0
  %653 = vmatpush1.bf16.msra.mxu0 0
  %654 = vmatprep.mubr.bf16.mxu0 %v534
  %655 = vmatmul.mubr.bf16.gmra.mrb[0].mxu0 %v529
  %v656 = vpop.f32.mrb[0].mxu0
  %v657 = vadd.f32 %v516, %v656
  %v658 = vpop.f32.mrb[0].mxu0
  %v659 = vadd.f32 %v516, %v658
  %v660 = vpop.f32.mrb[0].mxu0
  %v661 = vadd.f32 %v521, %v660
  %v662 = vpop.f32.mrb[0].mxu0
  %v663 = vadd.f32 %v521, %v662
  %664 = vdwg.mxu0
  %vm665 = vcmp.gt.f32.partialorder %v571, 1.0
  %vm666 = vcmp.gt.f32.partialorder %v573, 1.0
  %vm667 = vcmp.gt.f32.partialorder %v614, 1.0
  %vm668 = vcmp.gt.f32.partialorder %v616, 1.0
  %vm669 = vcmp.gt.f32.partialorder %v657, 1.0
  %vm670 = vcmp.gt.f32.partialorder %v659, 1.0
  %vm671 = vcmp.gt.f32.partialorder %v575, 1.0
  %vm672 = vcmp.gt.f32.partialorder %v577, 1.0
  %vm673 = vcmp.gt.f32.partialorder %v618, 1.0
  %vm674 = vcmp.gt.f32.partialorder %v620, 1.0
  %vm675 = vcmp.gt.f32.partialorder %v661, 1.0
  %vm676 = vcmp.gt.f32.partialorder %v663, 1.0
  %v677 = vsel %vm665, 1, 0
  %v678 = vsel %vm666, 1, 0
  %v679 = vsel %vm667, 1, 0
  %v680 = vsel %vm668, 1, 0
  %v681 = vsel %vm669, 1, 0
  %v682 = vsel %vm670, 1, 0
  %v683 = vsel %vm671, 1, 0
  %v684 = vsel %vm672, 1, 0
  %v685 = vsel %vm673, 1, 0
  %v686 = vsel %vm674, 1, 0
  %v687 = vsel %vm675, 1, 0
  %v688 = vsel %vm676, 1, 0
  %v689 = vcvt.s32.f32 %v677
  %v690 = vcvt.s32.f32 %v678
  %v691 = vcvt.s32.f32 %v679
  %v692 = vcvt.s32.f32 %v680
  %v693 = vcvt.s32.f32 %v681
  %v694 = vcvt.s32.f32 %v682
  %v695 = vcvt.s32.f32 %v683
  %v696 = vcvt.s32.f32 %v684
  %v697 = vcvt.s32.f32 %v685
  %v698 = vcvt.s32.f32 %v686
  %v699 = vcvt.s32.f32 %v687
  %v700 = vcvt.s32.f32 %v688
  %v701 = vlaneseq
  %v702 = vand.u32 %v701, 127
  %v703 = vadd.s32 %v702, 128
  %v704 = vadd.s32 %v702, 256
  %v705 = vadd.s32 %v702, 384
  %v706 = vadd.s32 %v702, 512
  %v707 = vadd.s32 %v702, 640
  %vm708 = vcmp.lt.s32.totalorder %v702, 0
  %v709 = vsub.s32 0, %v702
  %v710 = vsel %vm708, %v709, %v702
  %v711 = vmul.u32.u64.compose %v710, 2863311531
  %v712 = vextract.low.u32 %v711
  %v713 = vextract.high.u32 %v711
  %v714 = vshrl.u32 %v713, 8
  %v715 = vmul.u32 %v714, 384
  %v716 = vsub.s32 %v710, %v715
  %v717 = vsub.s32 0, %v716
  %v718 = vsel %vm708, %v717, %v716
  %vm719 = vcmp.lt.s32.totalorder %v703, 0
  %v720 = vsub.s32 0, %v703
  %v721 = vsel %vm719, %v720, %v703
  %v722 = vmul.u32.u64.compose %v721, 2863311531
  %v723 = vextract.low.u32 %v722
  %v724 = vextract.high.u32 %v722
  %v725 = vshrl.u32 %v724, 8
  %v726 = vmul.u32 %v725, 384
  %v727 = vsub.s32 %v721, %v726
  %v728 = vsub.s32 0, %v727
  %v729 = vsel %vm719, %v728, %v727
  %vm730 = vcmp.lt.s32.totalorder %v704, 0
  %v731 = vsub.s32 0, %v704
  %v732 = vsel %vm730, %v731, %v704
  %v733 = vmul.u32.u64.compose %v732, 2863311531
  %v734 = vextract.low.u32 %v733
  %v735 = vextract.high.u32 %v733
  %v736 = vshrl.u32 %v735, 8
  %v737 = vmul.u32 %v736, 384
  %v738 = vsub.s32 %v732, %v737
  %v739 = vsub.s32 0, %v738
  %v740 = vsel %vm730, %v739, %v738
  %vm741 = vcmp.lt.s32.totalorder %v705, 0
  %v742 = vsub.s32 0, %v705
  %v743 = vsel %vm741, %v742, %v705
  %v744 = vmul.u32.u64.compose %v743, 2863311531
  %v745 = vextract.low.u32 %v744
  %v746 = vextract.high.u32 %v744
  %v747 = vshrl.u32 %v746, 8
  %v748 = vmul.u32 %v747, 384
  %v749 = vsub.s32 %v743, %v748
  %v750 = vsub.s32 0, %v749
  %v751 = vsel %vm741, %v750, %v749
  %vm752 = vcmp.lt.s32.totalorder %v706, 0
  %v753 = vsub.s32 0, %v706
  %v754 = vsel %vm752, %v753, %v706
  %v755 = vmul.u32.u64.compose %v754, 2863311531
  %v756 = vextract.low.u32 %v755
  %v757 = vextract.high.u32 %v755
  %v758 = vshrl.u32 %v757, 8
  %v759 = vmul.u32 %v758, 384
  %v760 = vsub.s32 %v754, %v759
  %v761 = vsub.s32 0, %v760
  %v762 = vsel %vm752, %v761, %v760
  %vm763 = vcmp.lt.s32.totalorder %v707, 0
  %v764 = vsub.s32 0, %v707
  %v765 = vsel %vm763, %v764, %v707
  %v766 = vmul.u32.u64.compose %v765, 2863311531
  %v767 = vextract.low.u32 %v766
  %v768 = vextract.high.u32 %v766
  %v769 = vshrl.u32 %v768, 8
  %v770 = vmul.u32 %v769, 384
  %v771 = vsub.s32 %v765, %v770
  %v772 = vsub.s32 0, %v771
  %v773 = vsel %vm763, %v772, %v771
  %vm774 = vcmp.ne.s32.totalorder %v718, 0
  %vm775 = vcmp.ne.s32.totalorder %v729, 0
  %vm776 = vcmp.ne.s32.totalorder %v740, 0
  %vm777 = vcmp.ne.s32.totalorder %v751, 0
  %vm778 = vcmp.ne.s32.totalorder %v762, 0
  %vm779 = vcmp.ne.s32.totalorder %v773, 0
  %vm780 = vcmp.lt.s32.totalorder %v718, 0
  %vm781 = vcmp.lt.s32.totalorder %v729, 0
  %vm782 = vcmp.lt.s32.totalorder %v740, 0
  %vm783 = vcmp.lt.s32.totalorder %v751, 0
  %vm784 = vcmp.lt.s32.totalorder %v762, 0
  %vm785 = vcmp.lt.s32.totalorder %v773, 0
  %vm786 = vmand %vm780, %vm774
  %vm787 = vmand %vm781, %vm775
  %vm788 = vmand %vm782, %vm776
  %vm789 = vmand %vm783, %vm777
  %vm790 = vmand %vm784, %vm778
  %vm791 = vmand %vm785, %vm779
  %v792 = vadd.s32 %v718, 384
  %v793 = vadd.s32 %v729, 384
  %v794 = vadd.s32 %v740, 384
  %v795 = vadd.s32 %v751, 384
  %v796 = vadd.s32 %v762, 384
  %v797 = vadd.s32 %v773, 384
  %v798 = vsel %vm786, %v792, %v718
  %v799 = vsel %vm787, %v793, %v729
  %v800 = vsel %vm788, %v794, %v740
  %v801 = vsel %vm789, %v795, %v751
  %v802 = vsel %vm790, %v796, %v762
  %v803 = vsel %vm791, %v797, %v773
  %vm804 = vcmp.lt.s32.totalorder %v798, 288
  %vm805 = vcmp.lt.s32.totalorder %v799, 288
  %vm806 = vcmp.lt.s32.totalorder %v800, 288
  %vm807 = vcmp.lt.s32.totalorder %v801, 288
  %vm808 = vcmp.lt.s32.totalorder %v802, 288
  %vm809 = vcmp.lt.s32.totalorder %v803, 288
  %vm810 = vcmp.lt.s32.totalorder %v798, 0
  %v811 = vsub.s32 0, %v798
  %v812 = vsel %vm810, %v811, %v798
  %v813 = vmul.u32.u64.compose %v812, 3817748708
  %v814 = vextract.low.u32 %v813
  %v815 = vextract.high.u32 %v813
  %v816 = vshrl.u32 %v815, 4
  %v817 = vmul.u32 %v816, 18
  %v818 = vsub.s32 %v812, %v817
  %v819 = vsub.s32 0, %v818
  %v820 = vsel %vm810, %v819, %v818
  %vm821 = vcmp.lt.s32.totalorder %v799, 0
  %v822 = vsub.s32 0, %v799
  %v823 = vsel %vm821, %v822, %v799
  %v824 = vmul.u32.u64.compose %v823, 3817748708
  %v825 = vextract.low.u32 %v824
  %v826 = vextract.high.u32 %v824
  %v827 = vshrl.u32 %v826, 4
  %v828 = vmul.u32 %v827, 18
  %v829 = vsub.s32 %v823, %v828
  %v830 = vsub.s32 0, %v829
  %v831 = vsel %vm821, %v830, %v829
  %vm832 = vcmp.lt.s32.totalorder %v800, 0
  %v833 = vsub.s32 0, %v800
  %v834 = vsel %vm832, %v833, %v800
  %v835 = vmul.u32.u64.compose %v834, 3817748708
  %v836 = vextract.low.u32 %v835
  %v837 = vextract.high.u32 %v835
  %v838 = vshrl.u32 %v837, 4
  %v839 = vmul.u32 %v838, 18
  %v840 = vsub.s32 %v834, %v839
  %v841 = vsub.s32 0, %v840
  %v842 = vsel %vm832, %v841, %v840
  %vm843 = vcmp.lt.s32.totalorder %v801, 0
  %v844 = vsub.s32 0, %v801
  %v845 = vsel %vm843, %v844, %v801
  %v846 = vmul.u32.u64.compose %v845, 3817748708
  %v847 = vextract.low.u32 %v846
  %v848 = vextract.high.u32 %v846
  %v849 = vshrl.u32 %v848, 4
  %v850 = vmul.u32 %v849, 18
  %v851 = vsub.s32 %v845, %v850
  %v852 = vsub.s32 0, %v851
  %v853 = vsel %vm843, %v852, %v851
  %vm854 = vcmp.lt.s32.totalorder %v802, 0
  %v855 = vsub.s32 0, %v802
  %v856 = vsel %vm854, %v855, %v802
  %v857 = vmul.u32.u64.compose %v856, 3817748708
  %v858 = vextract.low.u32 %v857
  %v859 = vextract.high.u32 %v857
  %v860 = vshrl.u32 %v859, 4
  %v861 = vmul.u32 %v860, 18
  %v862 = vsub.s32 %v856, %v861
  %v863 = vsub.s32 0, %v862
  %v864 = vsel %vm854, %v863, %v862
  %vm865 = vcmp.lt.s32.totalorder %v803, 0
  %v866 = vsub.s32 0, %v803
  %v867 = vsel %vm865, %v866, %v803
  %v868 = vmul.u32.u64.compose %v867, 3817748708
  %v869 = vextract.low.u32 %v868
  %v870 = vextract.high.u32 %v868
  %v871 = vshrl.u32 %v870, 4
  %v872 = vmul.u32 %v871, 18
  %v873 = vsub.s32 %v867, %v872
  %v874 = vsub.s32 0, %v873
  %v875 = vsel %vm865, %v874, %v873
  %vm876 = vcmp.ne.s32.totalorder %v820, 0
  %vm877 = vcmp.ne.s32.totalorder %v831, 0
  %vm878 = vcmp.ne.s32.totalorder %v842, 0
  %vm879 = vcmp.ne.s32.totalorder %v853, 0
  %vm880 = vcmp.ne.s32.totalorder %v864, 0
  %vm881 = vcmp.ne.s32.totalorder %v875, 0
  %vm882 = vcmp.lt.s32.totalorder %v820, 0
  %vm883 = vcmp.lt.s32.totalorder %v831, 0
  %vm884 = vcmp.lt.s32.totalorder %v842, 0
  %vm885 = vcmp.lt.s32.totalorder %v853, 0
  %vm886 = vcmp.lt.s32.totalorder %v864, 0
  %vm887 = vcmp.lt.s32.totalorder %v875, 0
  %vm888 = vmand %vm882, %vm876
  %vm889 = vmand %vm883, %vm877
  %vm890 = vmand %vm884, %vm878
  %vm891 = vmand %vm885, %vm879
  %vm892 = vmand %vm886, %vm880
  %vm893 = vmand %vm887, %vm881
  %v894 = vadd.s32 %v820, 18
  %v895 = vadd.s32 %v831, 18
  %v896 = vadd.s32 %v842, 18
  %v897 = vadd.s32 %v853, 18
  %v898 = vadd.s32 %v864, 18
  %v899 = vadd.s32 %v875, 18
  %v900 = vsel %vm888, %v894, %v820
  %v901 = vsel %vm889, %v895, %v831
  %v902 = vsel %vm890, %v896, %v842
  %v903 = vsel %vm891, %v897, %v853
  %v904 = vsel %vm892, %v898, %v864
  %v905 = vsel %vm893, %v899, %v875
  %vm906 = vcmp.lt.s32.totalorder %v900, 16
  %vm907 = vcmp.lt.s32.totalorder %v901, 16
  %vm908 = vcmp.lt.s32.totalorder %v902, 16
  %vm909 = vcmp.lt.s32.totalorder %v903, 16
  %vm910 = vcmp.lt.s32.totalorder %v904, 16
  %vm911 = vcmp.lt.s32.totalorder %v905, 16
  %vm912 = vmand %vm804, %vm906
  %vm913 = vmand %vm805, %vm907
  %vm914 = vmand %vm806, %vm908
  %vm915 = vmand %vm807, %vm909
  %vm916 = vmand %vm808, %vm910
  %vm917 = vmand %vm809, %vm911
  %v918 = vsel %vm912, 1, 0
  %v919 = vsel %vm913, 1, 0
  %v920 = vsel %vm914, 1, 0
  %v921 = vsel %vm915, 1, 0
  %v922 = vsel %vm916, 1, 0
  %v923 = vsel %vm917, 1, 0
  %vm924 = vcmp.eq.s32.totalorder %v918, 1
  %vm925 = vcmp.eq.s32.totalorder %v919, 1
  %vm926 = vcmp.eq.s32.totalorder %v920, 1
  %vm927 = vcmp.eq.s32.totalorder %v921, 1
  %vm928 = vcmp.eq.s32.totalorder %v922, 1
  %vm929 = vcmp.eq.s32.totalorder %v923, 1
  %v930 = vsel %vm924, %v689, 0.0
  %v931 = vsel %vm925, %v690, 0.0
  %v932 = vsel %vm926, %v691, 0.0
  %v933 = vsel %vm927, %v692, 0.0
  %v934 = vsel %vm928, %v693, 0.0
  %v935 = vsel %vm929, %v694, 0.0
  %v936 = vsel %vm924, %v695, 0.0
  %v937 = vsel %vm925, %v696, 0.0
  %v938 = vsel %vm926, %v697, 0.0
  %v939 = vsel %vm927, %v698, 0.0
  %v940 = vsel %vm928, %v699, 0.0
  %v941 = vsel %vm929, %v700, 0.0
  %v942 = vpack.c.bf16 %v936, %v930
  %v943 = vpack.c.bf16 %v937, %v931
  %v944 = vpack.c.bf16 %v938, %v932
  %v945 = vpack.c.bf16 %v939, %v933
  %v946 = vpack.c.bf16 %v940, %v934
  %v947 = vpack.c.bf16 %v941, %v935
  %954 = vrot.lane.b32.xlu0 %v942, 19
  %v955 = vpop.permute.xlu0 %954
  %956 = vrot.lane.b32.xlu0 %v943, 19
  %v957 = vpop.permute.xlu0 %956
  %958 = vrot.lane.b32.xlu0 %v944, 19
  %v959 = vpop.permute.xlu0 %958
  %960 = vrot.lane.b32.xlu0 %v945, 19
  %v961 = vpop.permute.xlu0 %960
  %962 = vrot.lane.b32.xlu0 %v946, 19
  %v963 = vpop.permute.xlu0 %962
  %964 = vrot.lane.b32.xlu0 %v947, 19
  %v965 = vpop.permute.xlu0 %964
  %vm966 = vcmask 154624
  %v967 = vsel %vm966, %v955, %v957
  %v968 = vsel %vm966, %v957, %v959
  %v969 = vsel %vm966, %v959, %v961
  %v970 = vsel %vm966, %v961, %v963
  %v971 = vsel %vm966, %v963, %v965
  %vm979 = vcmask 1047704
  %980 = vst.msk [vmem:[#allocation2] sm:$0xff] %vm979, %v955
  %981 = vst [vmem:[#allocation2 + $0x8] sm:$0xff] %v967
  %982 = vst [vmem:[#allocation2 + $0x10] sm:$0xff] %v968
  %983 = vst [vmem:[#allocation2 + $0x18] sm:$0xff] %v969
  %984 = vst [vmem:[#allocation2 + $0x20] sm:$0xff] %v970
  %985 = vst [vmem:[#allocation2 + $0x28] sm:$0xff] %v971
  %vm986 = vcmask 154624
  %987 = vst.msk [vmem:[#allocation2 + $0x30] sm:$0xff] %vm986, %v965
  %v988 = vld [vmem:[#allocation2] sm:$0xff]
  %v989 = vld [vmem:[#allocation2 + $0x8] sm:$0xff]
  %v990 = vld [vmem:[#allocation2 + $0x10] sm:$0xff]
  %v991 = vld [vmem:[#allocation2 + $0x18] sm:$0xff]
  %v992 = vld [vmem:[#allocation2 + $0x20] sm:$0xff]
  %v993 = vld [vmem:[#allocation2 + $0x28] sm:$0xff]
  %994 = vst [vmem:[#allocation3] sm:$0xff] %v988
  %995 = vst [vmem:[#allocation3 + $0x8] sm:$0xff] %v989
  %996 = vst [vmem:[#allocation3 + $0x10] sm:$0xff] %v990
  %997 = vst [vmem:[#allocation3 + $0x18] sm:$0xff] %v991
  %998 = vst [vmem:[#allocation3 + $0x20] sm:$0xff] %v992
  %999 = vst [vmem:[#allocation3 + $0x28] sm:$0xff] %v993
  %v1000 = vld [vmem:[#allocation2] sm:$0xff]
  %v1001 = vld [vmem:[#allocation2 + $0x8] sm:$0xff]
  %v1002 = vld [vmem:[#allocation2 + $0x10] sm:$0xff]
  %v1003 = vld [vmem:[#allocation2 + $0x18] sm:$0xff]
  %v1004 = vld [vmem:[#allocation2 + $0x20] sm:$0xff]
  %v1005 = vld [vmem:[#allocation2 + $0x28] sm:$0xff]
  %v1006 = vld [vmem:[#allocation2 + $0x30] sm:$0xff]
  %1014 = vrot.lane.b32.xlu0 %v1000, 127
  %v1015 = vpop.permute.xlu0 %1014
  %1016 = vrot.lane.b32.xlu0 %v1001, 127
  %v1017 = vpop.permute.xlu0 %1016
  %1018 = vrot.lane.b32.xlu0 %v1002, 127
  %v1019 = vpop.permute.xlu0 %1018
  %1020 = vrot.lane.b32.xlu0 %v1003, 127
  %v1021 = vpop.permute.xlu0 %1020
  %1022 = vrot.lane.b32.xlu0 %v1004, 127
  %v1023 = vpop.permute.xlu0 %1022
  %1024 = vrot.lane.b32.xlu0 %v1005, 127
  %v1025 = vpop.permute.xlu0 %1024
  %1026 = vrot.lane.b32.xlu0 %v1006, 127
  %v1027 = vpop.permute.xlu0 %1026
  %v1028 = vsel %vm107, %v1015, %v1017
  %v1029 = vsel %vm107, %v1017, %v1019
  %v1030 = vsel %vm107, %v1019, %v1021
  %v1031 = vsel %vm107, %v1021, %v1023
  %v1032 = vsel %vm107, %v1023, %v1025
  %v1033 = vsel %vm107, %v1025, %v1027
  %1040 = vst [vmem:[#allocation3 + $0x30] sm:$0xff] %v1028
  %1041 = vst [vmem:[#allocation3 + $0x38] sm:$0xff] %v1029
  %1042 = vst [vmem:[#allocation3 + $0x40] sm:$0xff] %v1030
  %1043 = vst [vmem:[#allocation3 + $0x48] sm:$0xff] %v1031
  %1044 = vst [vmem:[#allocation3 + $0x50] sm:$0xff] %v1032
  %1045 = vst [vmem:[#allocation3 + $0x58] sm:$0xff] %v1033
  %v1046 = vld [vmem:[#allocation2] sm:$0xff]
  %v1047 = vld [vmem:[#allocation2 + $0x8] sm:$0xff]
  %v1048 = vld [vmem:[#allocation2 + $0x10] sm:$0xff]
  %v1049 = vld [vmem:[#allocation2 + $0x18] sm:$0xff]
  %v1050 = vld [vmem:[#allocation2 + $0x20] sm:$0xff]
  %v1051 = vld [vmem:[#allocation2 + $0x28] sm:$0xff]
  %v1052 = vld [vmem:[#allocation2 + $0x30] sm:$0xff]
  %1060 = vrot.lane.b32.xlu0 %v1046, 126
  %v1061 = vpop.permute.xlu0 %1060
  %1062 = vrot.lane.b32.xlu0 %v1047, 126
  %v1063 = vpop.permute.xlu0 %1062
  %1064 = vrot.lane.b32.xlu0 %v1048, 126
  %v1065 = vpop.permute.xlu0 %1064
  %1066 = vrot.lane.b32.xlu0 %v1049, 126
  %v1067 = vpop.permute.xlu0 %1066
  %1068 = vrot.lane.b32.xlu0 %v1050, 126
  %v1069 = vpop.permute.xlu0 %1068
  %1070 = vrot.lane.b32.xlu0 %v1051, 126
  %v1071 = vpop.permute.xlu0 %1070
  %1072 = vrot.lane.b32.xlu0 %v1052, 126
  %v1073 = vpop.permute.xlu0 %1072
  %v1074 = vsel %vm154, %v1061, %v1063
  %v1075 = vsel %vm154, %v1063, %v1065
  %v1076 = vsel %vm154, %v1065, %v1067
  %v1077 = vsel %vm154, %v1067, %v1069
  %v1078 = vsel %vm154, %v1069, %v1071
  %v1079 = vsel %vm154, %v1071, %v1073
  %1086 = vst [vmem:[#allocation3 + $0x60] sm:$0xff] %v1074
  %1087 = vst [vmem:[#allocation3 + $0x68] sm:$0xff] %v1075
  %1088 = vst [vmem:[#allocation3 + $0x70] sm:$0xff] %v1076
  %1089 = vst [vmem:[#allocation3 + $0x78] sm:$0xff] %v1077
  %1090 = vst [vmem:[#allocation3 + $0x80] sm:$0xff] %v1078
  %1091 = vst [vmem:[#allocation3 + $0x88] sm:$0xff] %v1079
  %v1092 = vld [vmem:[#allocation2] sm:$0xff]
  %v1093 = vld [vmem:[#allocation2 + $0x8] sm:$0xff]
  %v1094 = vld [vmem:[#allocation2 + $0x10] sm:$0xff]
  %v1095 = vld [vmem:[#allocation2 + $0x18] sm:$0xff]
  %v1096 = vld [vmem:[#allocation2 + $0x20] sm:$0xff]
  %v1097 = vld [vmem:[#allocation2 + $0x28] sm:$0xff]
  %v1098 = vld [vmem:[#allocation2 + $0x30] sm:$0xff]
  %1106 = vrot.lane.b32.xlu0 %v1092, 110
  %v1107 = vpop.permute.xlu0 %1106
  %1108 = vrot.lane.b32.xlu0 %v1093, 110
  %v1109 = vpop.permute.xlu0 %1108
  %1110 = vrot.lane.b32.xlu0 %v1094, 110
  %v1111 = vpop.permute.xlu0 %1110
  %1112 = vrot.lane.b32.xlu0 %v1095, 110
  %v1113 = vpop.permute.xlu0 %1112
  %1114 = vrot.lane.b32.xlu0 %v1096, 110
  %v1115 = vpop.permute.xlu0 %1114
  %1116 = vrot.lane.b32.xlu0 %v1097, 110
  %v1117 = vpop.permute.xlu0 %1116
  %1118 = vrot.lane.b32.xlu0 %v1098, 110
  %v1119 = vpop.permute.xlu0 %1118
  %v1120 = vsel %vm201, %v1107, %v1109
  %v1121 = vsel %vm201, %v1109, %v1111
  %v1122 = vsel %vm201, %v1111, %v1113
  %v1123 = vsel %vm201, %v1113, %v1115
  %v1124 = vsel %vm201, %v1115, %v1117
  %v1125 = vsel %vm201, %v1117, %v1119
  %1132 = vst [vmem:[#allocation3 + $0x90] sm:$0xff] %v1120
  %1133 = vst [vmem:[#allocation3 + $0x98] sm:$0xff] %v1121
  %1134 = vst [vmem:[#allocation3 + $0xa0] sm:$0xff] %v1122
  %1135 = vst [vmem:[#allocation3 + $0xa8] sm:$0xff] %v1123
  %1136 = vst [vmem:[#allocation3 + $0xb0] sm:$0xff] %v1124
  %1137 = vst [vmem:[#allocation3 + $0xb8] sm:$0xff] %v1125
  %v1138 = vld [vmem:[#allocation2] sm:$0xff]
  %v1139 = vld [vmem:[#allocation2 + $0x8] sm:$0xff]
  %v1140 = vld [vmem:[#allocation2 + $0x10] sm:$0xff]
  %v1141 = vld [vmem:[#allocation2 + $0x18] sm:$0xff]
  %v1142 = vld [vmem:[#allocation2 + $0x20] sm:$0xff]
  %v1143 = vld [vmem:[#allocation2 + $0x28] sm:$0xff]
  %v1144 = vld [vmem:[#allocation2 + $0x30] sm:$0xff]
  %1152 = vrot.lane.b32.xlu0 %v1138, 109
  %v1153 = vpop.permute.xlu0 %1152
  %1154 = vrot.lane.b32.xlu0 %v1139, 109
  %v1155 = vpop.permute.xlu0 %1154
  %1156 = vrot.lane.b32.xlu0 %v1140, 109
  %v1157 = vpop.permute.xlu0 %1156
  %1158 = vrot.lane.b32.xlu0 %v1141, 109
  %v1159 = vpop.permute.xlu0 %1158
  %1160 = vrot.lane.b32.xlu0 %v1142, 109
  %v1161 = vpop.permute.xlu0 %1160
  %1162 = vrot.lane.b32.xlu0 %v1143, 109
  %v1163 = vpop.permute.xlu0 %1162
  %1164 = vrot.lane.b32.xlu0 %v1144, 109
  %v1165 = vpop.permute.xlu0 %1164
  %v1166 = vsel %vm248, %v1153, %v1155
  %v1167 = vsel %vm248, %v1155, %v1157
  %v1168 = vsel %vm248, %v1157, %v1159
  %v1169 = vsel %vm248, %v1159, %v1161
  %v1170 = vsel %vm248, %v1161, %v1163
  %v1171 = vsel %vm248, %v1163, %v1165
  %1178 = vst [vmem:[#allocation3 + $0xc0] sm:$0xff] %v1166
  %1179 = vst [vmem:[#allocation3 + $0xc8] sm:$0xff] %v1167
  %1180 = vst [vmem:[#allocation3 + $0xd0] sm:$0xff] %v1168
  %1181 = vst [vmem:[#allocation3 + $0xd8] sm:$0xff] %v1169
  %1182 = vst [vmem:[#allocation3 + $0xe0] sm:$0xff] %v1170
  %1183 = vst [vmem:[#allocation3 + $0xe8] sm:$0xff] %v1171
  %v1184 = vld [vmem:[#allocation2] sm:$0xff]
  %v1185 = vld [vmem:[#allocation2 + $0x8] sm:$0xff]
  %v1186 = vld [vmem:[#allocation2 + $0x10] sm:$0xff]
  %v1187 = vld [vmem:[#allocation2 + $0x18] sm:$0xff]
  %v1188 = vld [vmem:[#allocation2 + $0x20] sm:$0xff]
  %v1189 = vld [vmem:[#allocation2 + $0x28] sm:$0xff]
  %v1190 = vld [vmem:[#allocation2 + $0x30] sm:$0xff]
  %1198 = vrot.lane.b32.xlu0 %v1184, 108
  %v1199 = vpop.permute.xlu0 %1198
  %1200 = vrot.lane.b32.xlu0 %v1185, 108
  %v1201 = vpop.permute.xlu0 %1200
  %1202 = vrot.lane.b32.xlu0 %v1186, 108
  %v1203 = vpop.permute.xlu0 %1202
  %1204 = vrot.lane.b32.xlu0 %v1187, 108
  %v1205 = vpop.permute.xlu0 %1204
  %1206 = vrot.lane.b32.xlu0 %v1188, 108
  %v1207 = vpop.permute.xlu0 %1206
  %1208 = vrot.lane.b32.xlu0 %v1189, 108
  %v1209 = vpop.permute.xlu0 %1208
  %1210 = vrot.lane.b32.xlu0 %v1190, 108
  %v1211 = vpop.permute.xlu0 %1210
  %v1212 = vsel %vm295, %v1199, %v1201
  %v1213 = vsel %vm295, %v1201, %v1203
  %v1214 = vsel %vm295, %v1203, %v1205
  %v1215 = vsel %vm295, %v1205, %v1207
  %v1216 = vsel %vm295, %v1207, %v1209
  %v1217 = vsel %vm295, %v1209, %v1211
  %1224 = vst [vmem:[#allocation3 + $0xf0] sm:$0xff] %v1212
  %1225 = vst [vmem:[#allocation3 + $0xf8] sm:$0xff] %v1213
  %1226 = vst [vmem:[#allocation3 + $0x100] sm:$0xff] %v1214
  %1227 = vst [vmem:[#allocation3 + $0x108] sm:$0xff] %v1215
  %1228 = vst [vmem:[#allocation3 + $0x110] sm:$0xff] %v1216
  %1229 = vst [vmem:[#allocation3 + $0x118] sm:$0xff] %v1217
  %v1230 = vld [vmem:[#allocation2] sm:$0xff]
  %v1231 = vld [vmem:[#allocation2 + $0x8] sm:$0xff]
  %v1232 = vld [vmem:[#allocation2 + $0x10] sm:$0xff]
  %v1233 = vld [vmem:[#allocation2 + $0x18] sm:$0xff]
  %v1234 = vld [vmem:[#allocation2 + $0x20] sm:$0xff]
  %v1235 = vld [vmem:[#allocation2 + $0x28] sm:$0xff]
  %v1236 = vld [vmem:[#allocation2 + $0x30] sm:$0xff]
  %1244 = vrot.lane.b32.xlu0 %v1230, 92
  %v1245 = vpop.permute.xlu0 %1244
  %1246 = vrot.lane.b32.xlu0 %v1231, 92
  %v1247 = vpop.permute.xlu0 %1246
  %1248 = vrot.lane.b32.xlu0 %v1232, 92
  %v1249 = vpop.permute.xlu0 %1248
  %1250 = vrot.lane.b32.xlu0 %v1233, 92
  %v1251 = vpop.permute.xlu0 %1250
  %1252 = vrot.lane.b32.xlu0 %v1234, 92
  %v1253 = vpop.permute.xlu0 %1252
  %1254 = vrot.lane.b32.xlu0 %v1235, 92
  %v1255 = vpop.permute.xlu0 %1254
  %1256 = vrot.lane.b32.xlu0 %v1236, 92
  %v1257 = vpop.permute.xlu0 %1256
  %v1258 = vsel %vm342, %v1245, %v1247
  %v1259 = vsel %vm342, %v1247, %v1249
  %v1260 = vsel %vm342, %v1249, %v1251
  %v1261 = vsel %vm342, %v1251, %v1253
  %v1262 = vsel %vm342, %v1253, %v1255
  %v1263 = vsel %vm342, %v1255, %v1257
  %1270 = vst [vmem:[#allocation3 + $0x120] sm:$0xff] %v1258
  %1271 = vst [vmem:[#allocation3 + $0x128] sm:$0xff] %v1259
  %1272 = vst [vmem:[#allocation3 + $0x130] sm:$0xff] %v1260
  %1273 = vst [vmem:[#allocation3 + $0x138] sm:$0xff] %v1261
  %1274 = vst [vmem:[#allocation3 + $0x140] sm:$0xff] %v1262
  %1275 = vst [vmem:[#allocation3 + $0x148] sm:$0xff] %v1263
  %v1276 = vld [vmem:[#allocation2] sm:$0xff]
  %v1277 = vld [vmem:[#allocation2 + $0x8] sm:$0xff]
  %v1278 = vld [vmem:[#allocation2 + $0x10] sm:$0xff]
  %v1279 = vld [vmem:[#allocation2 + $0x18] sm:$0xff]
  %v1280 = vld [vmem:[#allocation2 + $0x20] sm:$0xff]
  %v1281 = vld [vmem:[#allocation2 + $0x28] sm:$0xff]
  %v1282 = vld [vmem:[#allocation2 + $0x30] sm:$0xff]
  %1290 = vrot.lane.b32.xlu0 %v1276, 91
  %v1291 = vpop.permute.xlu0 %1290
  %1292 = vrot.lane.b32.xlu0 %v1277, 91
  %v1293 = vpop.permute.xlu0 %1292
  %1294 = vrot.lane.b32.xlu0 %v1278, 91
  %v1295 = vpop.permute.xlu0 %1294
  %1296 = vrot.lane.b32.xlu0 %v1279, 91
  %v1297 = vpop.permute.xlu0 %1296
  %1298 = vrot.lane.b32.xlu0 %v1280, 91
  %v1299 = vpop.permute.xlu0 %1298
  %1300 = vrot.lane.b32.xlu0 %v1281, 91
  %v1301 = vpop.permute.xlu0 %1300
  %1302 = vrot.lane.b32.xlu0 %v1282, 91
  %v1303 = vpop.permute.xlu0 %1302
  %v1304 = vsel %vm389, %v1291, %v1293
  %v1305 = vsel %vm389, %v1293, %v1295
  %v1306 = vsel %vm389, %v1295, %v1297
  %v1307 = vsel %vm389, %v1297, %v1299
  %v1308 = vsel %vm389, %v1299, %v1301
  %v1309 = vsel %vm389, %v1301, %v1303
  %1316 = vst [vmem:[#allocation3 + $0x150] sm:$0xff] %v1304
  %1317 = vst [vmem:[#allocation3 + $0x158] sm:$0xff] %v1305
  %1318 = vst [vmem:[#allocation3 + $0x160] sm:$0xff] %v1306
  %1319 = vst [vmem:[#allocation3 + $0x168] sm:$0xff] %v1307
  %1320 = vst [vmem:[#allocation3 + $0x170] sm:$0xff] %v1308
  %1321 = vst [vmem:[#allocation3 + $0x178] sm:$0xff] %v1309
  %v1322 = vld [vmem:[#allocation2] sm:$0xff]
  %v1323 = vld [vmem:[#allocation2 + $0x8] sm:$0xff]
  %v1324 = vld [vmem:[#allocation2 + $0x10] sm:$0xff]
  %v1325 = vld [vmem:[#allocation2 + $0x18] sm:$0xff]
  %v1326 = vld [vmem:[#allocation2 + $0x20] sm:$0xff]
  %v1327 = vld [vmem:[#allocation2 + $0x28] sm:$0xff]
  %v1328 = vld [vmem:[#allocation2 + $0x30] sm:$0xff]
  %1336 = vrot.lane.b32.xlu0 %v1322, 90
  %v1337 = vpop.permute.xlu0 %1336
  %1338 = vrot.lane.b32.xlu0 %v1323, 90
  %v1339 = vpop.permute.xlu0 %1338
  %1340 = vrot.lane.b32.xlu0 %v1324, 90
  %v1341 = vpop.permute.xlu0 %1340
  %1342 = vrot.lane.b32.xlu0 %v1325, 90
  %v1343 = vpop.permute.xlu0 %1342
  %1344 = vrot.lane.b32.xlu0 %v1326, 90
  %v1345 = vpop.permute.xlu0 %1344
  %1346 = vrot.lane.b32.xlu0 %v1327, 90
  %v1347 = vpop.permute.xlu0 %1346
  %1348 = vrot.lane.b32.xlu0 %v1328, 90
  %v1349 = vpop.permute.xlu0 %1348
  %v1350 = vsel %vm436, %v1337, %v1339
  %v1351 = vsel %vm436, %v1339, %v1341
  %v1352 = vsel %vm436, %v1341, %v1343
  %v1353 = vsel %vm436, %v1343, %v1345
  %v1354 = vsel %vm436, %v1345, %v1347
  %v1355 = vsel %vm436, %v1347, %v1349
  %1362 = vst [vmem:[#allocation3 + $0x180] sm:$0xff] %v1350
  %1363 = vst [vmem:[#allocation3 + $0x188] sm:$0xff] %v1351
  %1364 = vst [vmem:[#allocation3 + $0x190] sm:$0xff] %v1352
  %1365 = vst [vmem:[#allocation3 + $0x198] sm:$0xff] %v1353
  %1366 = vst [vmem:[#allocation3 + $0x1a0] sm:$0xff] %v1354
  %1367 = vst [vmem:[#allocation3 + $0x1a8] sm:$0xff] %v1355
  %v1368 = vld [vmem:[%s3] sm:$0xff]
  %v1369 = vld [vmem:[%s3 + $0x8] sm:$0xff]
  %v1370 = vld [vmem:[#allocation3] sm:$0xff]
  %v1371 = vld [vmem:[#allocation3 + $0x8] sm:$0xff]
  %v1372 = vld [vmem:[#allocation3 + $0x10] sm:$0xff]
  %v1373 = vld [vmem:[#allocation3 + $0x18] sm:$0xff]
  %v1374 = vld [vmem:[#allocation3 + $0x20] sm:$0xff]
  %v1375 = vld [vmem:[#allocation3 + $0x28] sm:$0xff]
  %v1376 = vld [vmem:[#allocation3 + $0x30] sm:$0xff]
  %v1377 = vld [vmem:[#allocation3 + $0x38] sm:$0xff]
  %v1378 = vld [vmem:[#allocation3 + $0x40] sm:$0xff]
  %v1379 = vld [vmem:[#allocation3 + $0x48] sm:$0xff]
  %v1380 = vld [vmem:[#allocation3 + $0x50] sm:$0xff]
  %v1381 = vld [vmem:[#allocation3 + $0x58] sm:$0xff]
  %v1382 = vld [vmem:[#allocation3 + $0x60] sm:$0xff]
  %v1383 = vld [vmem:[#allocation3 + $0x68] sm:$0xff]
  %v1384 = vld [vmem:[#allocation3 + $0x70] sm:$0xff]
  %v1385 = vld [vmem:[#allocation3 + $0x78] sm:$0xff]
  %v1386 = vld [vmem:[#allocation3 + $0x80] sm:$0xff]
  %v1387 = vld [vmem:[#allocation3 + $0x88] sm:$0xff]
  %v1388 = vld [vmem:[#allocation3 + $0x90] sm:$0xff]
  %v1389 = vld [vmem:[#allocation3 + $0x98] sm:$0xff]
  %v1390 = vld [vmem:[#allocation3 + $0xa0] sm:$0xff]
  %v1391 = vld [vmem:[#allocation3 + $0xa8] sm:$0xff]
  %v1392 = vld [vmem:[#allocation3 + $0xb0] sm:$0xff]
  %v1393 = vld [vmem:[#allocation3 + $0xb8] sm:$0xff]
  %v1394 = vld [vmem:[#allocation3 + $0xc0] sm:$0xff]
  %v1395 = vld [vmem:[#allocation3 + $0xc8] sm:$0xff]
  %v1396 = vld [vmem:[#allocation3 + $0xd0] sm:$0xff]
  %v1397 = vld [vmem:[#allocation3 + $0xd8] sm:$0xff]
  %v1398 = vld [vmem:[#allocation3 + $0xe0] sm:$0xff]
  %v1399 = vld [vmem:[#allocation3 + $0xe8] sm:$0xff]
  %v1400 = vld [vmem:[#allocation3 + $0xf0] sm:$0xff]
  %v1401 = vld [vmem:[#allocation3 + $0xf8] sm:$0xff]
  %v1402 = vld [vmem:[#allocation3 + $0x100] sm:$0xff]
  %v1403 = vld [vmem:[#allocation3 + $0x108] sm:$0xff]
  %v1404 = vld [vmem:[#allocation3 + $0x110] sm:$0xff]
  %v1405 = vld [vmem:[#allocation3 + $0x118] sm:$0xff]
  %v1406 = vld [vmem:[#allocation3 + $0x120] sm:$0xff]
  %v1407 = vld [vmem:[#allocation3 + $0x128] sm:$0xff]
  %v1408 = vld [vmem:[#allocation3 + $0x130] sm:$0xff]
  %v1409 = vld [vmem:[#allocation3 + $0x138] sm:$0xff]
  %v1410 = vld [vmem:[#allocation3 + $0x140] sm:$0xff]
  %v1411 = vld [vmem:[#allocation3 + $0x148] sm:$0xff]
  %v1412 = vld [vmem:[#allocation3 + $0x150] sm:$0xff]
  %v1413 = vld [vmem:[#allocation3 + $0x158] sm:$0xff]
  %v1414 = vld [vmem:[#allocation3 + $0x160] sm:$0xff]
  %v1415 = vld [vmem:[#allocation3 + $0x168] sm:$0xff]
  %v1416 = vld [vmem:[#allocation3 + $0x170] sm:$0xff]
  %v1417 = vld [vmem:[#allocation3 + $0x178] sm:$0xff]
  %v1418 = vld [vmem:[#allocation3 + $0x180] sm:$0xff]
  %v1419 = vld [vmem:[#allocation3 + $0x188] sm:$0xff]
  %v1420 = vld [vmem:[#allocation3 + $0x190] sm:$0xff]
  %v1421 = vld [vmem:[#allocation3 + $0x198] sm:$0xff]
  %v1422 = vld [vmem:[#allocation3 + $0x1a0] sm:$0xff]
  %v1423 = vld [vmem:[#allocation3 + $0x1a8] sm:$0xff]
  %v1424 = vld [vmem:[%s4] sm:$0xff]
  %v1425 = vld [vmem:[%s4 + $0x8] sm:$0xff]
  %1427 = vset.pattern.permute.xlu0 0
  %1428 = vperm.xlu0 %1427, %v1424
  %v1429 = vpop.permute.xlu0 %1428
  %1432 = vset.pattern.permute.xlu0 0
  %1433 = vperm.xlu0 %1432, %v1425
  %v1434 = vpop.permute.xlu0 %1433
  %v1438 = vunpack.c.l.b16 %v1368
  %v1439 = vunpack.c.h.b16 %v1368
  %v1440 = vunpack.c.l.b16 %v1369
  %v1441 = vunpack.c.h.b16 %v1369
  %v1442 = vpack.c.b16 %v1440, %v1438
  %v1443 = vpack.c.b16 %v1441, %v1439
  %v1446 = vsel %vm532, %v1443, 0
  %1448 = vmatprep.subr.bf16.mxu0 %v1371
  %1449 = vmatpush1.bf16.msra.mxu0 %v1370
  %1450 = vmatprep.subr.bf16.mxu0 %v1377
  %1451 = vmatpush1.bf16.msra.mxu0 %v1376
  %1452 = vmatprep.subr.bf16.mxu0 %v1383
  %1453 = vmatpush1.bf16.msra.mxu0 %v1382
  %1454 = vmatprep.subr.bf16.mxu0 %v1389
  %1455 = vmatpush1.bf16.msra.mxu0 %v1388
  %1456 = vmatprep.subr.bf16.mxu0 %v1395
  %1457 = vmatpush1.bf16.msra.mxu0 %v1394
  %1458 = vmatprep.subr.bf16.mxu0 %v1401
  %1459 = vmatpush1.bf16.msra.mxu0 %v1400
  %1460 = vmatprep.subr.bf16.mxu0 %v1407
  %1461 = vmatpush1.bf16.msra.mxu0 %v1406
  %1462 = vmatprep.subr.bf16.mxu0 %v1413
  %1463 = vmatpush1.bf16.msra.mxu0 %v1412
  %1464 = vmatprep.subr.bf16.mxu0 %v1419
  %1465 = vmatpush1.bf16.msra.mxu0 %v1418
  %1466 = vmatprep.subr.bf16.mxu0 0
  %1467 = vmatpush1.bf16.msra.mxu0 0
  %1468 = vmatprep.subr.bf16.mxu0 0
  %1469 = vmatpush1.bf16.msra.mxu0 0
  %1470 = vmatprep.subr.bf16.mxu0 0
  %1471 = vmatpush1.bf16.msra.mxu0 0
  %1472 = vmatprep.subr.bf16.mxu0 0
  %1473 = vmatpush1.bf16.msra.mxu0 0
  %1474 = vmatprep.subr.bf16.mxu0 0
  %1475 = vmatpush1.bf16.msra.mxu0 0
  %1476 = vmatprep.subr.bf16.mxu0 0
  %1477 = vmatpush1.bf16.msra.mxu0 0
  %1478 = vmatprep.subr.bf16.mxu0 0
  %1479 = vmatpush1.bf16.msra.mxu0 0
  %1480 = vmatprep.mubr.bf16.mxu0 %v1446
  %1481 = vmatmul.mubr.bf16.gmra.mrb[0].mxu0 %v1442
  %v1482 = vpop.f32.mrb[0].mxu0
  %v1483 = vadd.f32 %v1429, %v1482
  %v1484 = vpop.f32.mrb[0].mxu0
  %v1485 = vadd.f32 %v1429, %v1484
  %v1486 = vpop.f32.mrb[0].mxu0
  %v1487 = vadd.f32 %v1434, %v1486
  %v1488 = vpop.f32.mrb[0].mxu0
  %v1489 = vadd.f32 %v1434, %v1488
  %1490 = vdwg.mxu0
  %1491 = vmatprep.subr.bf16.mxu0 %v1373
  %1492 = vmatpush1.bf16.msra.mxu0 %v1372
  %1493 = vmatprep.subr.bf16.mxu0 %v1379
  %1494 = vmatpush1.bf16.msra.mxu0 %v1378
  %1495 = vmatprep.subr.bf16.mxu0 %v1385
  %1496 = vmatpush1.bf16.msra.mxu0 %v1384
  %1497 = vmatprep.subr.bf16.mxu0 %v1391
  %1498 = vmatpush1.bf16.msra.mxu0 %v1390
  %1499 = vmatprep.subr.bf16.mxu0 %v1397
  %1500 = vmatpush1.bf16.msra.mxu0 %v1396
  %1501 = vmatprep.subr.bf16.mxu0 %v1403
  %1502 = vmatpush1.bf16.msra.mxu0 %v1402
  %1503 = vmatprep.subr.bf16.mxu0 %v1409
  %1504 = vmatpush1.bf16.msra.mxu0 %v1408
  %1505 = vmatprep.subr.bf16.mxu0 %v1415
  %1506 = vmatpush1.bf16.msra.mxu0 %v1414
  %1507 = vmatprep.subr.bf16.mxu0 %v1421
  %1508 = vmatpush1.bf16.msra.mxu0 %v1420
  %1509 = vmatprep.subr.bf16.mxu0 0
  %1510 = vmatpush1.bf16.msra.mxu0 0
  %1511 = vmatprep.subr.bf16.mxu0 0
  %1512 = vmatpush1.bf16.msra.mxu0 0
  %1513 = vmatprep.subr.bf16.mxu0 0
  %1514 = vmatpush1.bf16.msra.mxu0 0
  %1515 = vmatprep.subr.bf16.mxu0 0
  %1516 = vmatpush1.bf16.msra.mxu0 0
  %1517 = vmatprep.subr.bf16.mxu0 0
  %1518 = vmatpush1.bf16.msra.mxu0 0
  %1519 = vmatprep.subr.bf16.mxu0 0
  %1520 = vmatpush1.bf16.msra.mxu0 0
  %1521 = vmatprep.subr.bf16.mxu0 0
  %1522 = vmatpush1.bf16.msra.mxu0 0
  %1523 = vmatprep.mubr.bf16.mxu0 %v1446
  %1524 = vmatmul.mubr.bf16.gmra.mrb[0].mxu0 %v1442
  %v1525 = vpop.f32.mrb[0].mxu0
  %v1526 = vadd.f32 %v1429, %v1525
  %v1527 = vpop.f32.mrb[0].mxu0
  %v1528 = vadd.f32 %v1429, %v1527
  %v1529 = vpop.f32.mrb[0].mxu0
  %v1530 = vadd.f32 %v1434, %v1529
  %v1531 = vpop.f32.mrb[0].mxu0
  %v1532 = vadd.f32 %v1434, %v1531
  %1533 = vdwg.mxu0
  %1534 = vmatprep.subr.bf16.mxu0 %v1375
  %1535 = vmatpush1.bf16.msra.mxu0 %v1374
  %1536 = vmatprep.subr.bf16.mxu0 %v1381
  %1537 = vmatpush1.bf16.msra.mxu0 %v1380
  %1538 = vmatprep.subr.bf16.mxu0 %v1387
  %1539 = vmatpush1.bf16.msra.mxu0 %v1386
  %1540 = vmatprep.subr.bf16.mxu0 %v1393
  %1541 = vmatpush1.bf16.msra.mxu0 %v1392
  %1542 = vmatprep.subr.bf16.mxu0 %v1399
  %1543 = vmatpush1.bf16.msra.mxu0 %v1398
  %1544 = vmatprep.subr.bf16.mxu0 %v1405
  %1545 = vmatpush1.bf16.msra.mxu0 %v1404
  %1546 = vmatprep.subr.bf16.mxu0 %v1411
  %1547 = vmatpush1.bf16.msra.mxu0 %v1410
  %1548 = vmatprep.subr.bf16.mxu0 %v1417
  %1549 = vmatpush1.bf16.msra.mxu0 %v1416
  %1550 = vmatprep.subr.bf16.mxu0 %v1423
  %1551 = vmatpush1.bf16.msra.mxu0 %v1422
  %1552 = vmatprep.subr.bf16.mxu0 0
  %1553 = vmatpush1.bf16.msra.mxu0 0
  %1554 = vmatprep.subr.bf16.mxu0 0
  %1555 = vmatpush1.bf16.msra.mxu0 0
  %1556 = vmatprep.subr.bf16.mxu0 0
  %1557 = vmatpush1.bf16.msra.mxu0 0
  %1558 = vmatprep.subr.bf16.mxu0 0
  %1559 = vmatpush1.bf16.msra.mxu0 0
  %1560 = vmatprep.subr.bf16.mxu0 0
  %1561 = vmatpush1.bf16.msra.mxu0 0
  %1562 = vmatprep.subr.bf16.mxu0 0
  %1563 = vmatpush1.bf16.msra.mxu0 0
  %1564 = vmatprep.subr.bf16.mxu0 0
  %1565 = vmatpush1.bf16.msra.mxu0 0
  %1566 = vmatprep.mubr.bf16.mxu0 %v1446
  %1567 = vmatmul.mubr.bf16.gmra.mrb[0].mxu0 %v1442
  %v1568 = vpop.f32.mrb[0].mxu0
  %v1569 = vadd.f32 %v1429, %v1568
  %v1570 = vpop.f32.mrb[0].mxu0
  %v1571 = vadd.f32 %v1429, %v1570
  %v1572 = vpop.f32.mrb[0].mxu0
  %v1573 = vadd.f32 %v1434, %v1572
  %v1574 = vpop.f32.mrb[0].mxu0
  %v1575 = vadd.f32 %v1434, %v1574
  %1576 = vdwg.mxu0
  %v1577 = vmul.f32 %v571, 0.9
  %v1578 = vmul.f32 %v573, 0.9
  %v1579 = vmul.f32 %v614, 0.9
  %v1580 = vmul.f32 %v616, 0.9
  %v1581 = vmul.f32 %v657, 0.9
  %v1582 = vmul.f32 %v659, 0.9
  %v1583 = vmul.f32 %v575, 0.9
  %v1584 = vmul.f32 %v577, 0.9
  %v1585 = vmul.f32 %v618, 0.9
  %v1586 = vmul.f32 %v620, 0.9
  %v1587 = vmul.f32 %v661, 0.9
  %v1588 = vmul.f32 %v663, 0.9
  %v1589 = vadd.f32 %v1577, %v1483
  %v1590 = vadd.f32 %v1578, %v1485
  %v1591 = vadd.f32 %v1579, %v1526
  %v1592 = vadd.f32 %v1580, %v1528
  %v1593 = vadd.f32 %v1581, %v1569
  %v1594 = vadd.f32 %v1582, %v1571
  %v1595 = vadd.f32 %v1583, %v1487
  %v1596 = vadd.f32 %v1584, %v1489
  %v1597 = vadd.f32 %v1585, %v1530
  %v1598 = vadd.f32 %v1586, %v1532
  %v1599 = vadd.f32 %v1587, %v1573
  %v1600 = vadd.f32 %v1588, %v1575
  %v1601 = vsub.f32 %v1589, %v689
  %v1602 = vsub.f32 %v1590, %v690
  %v1603 = vsub.f32 %v1591, %v691
  %v1604 = vsub.f32 %v1592, %v692
  %v1605 = vsub.f32 %v1593, %v693
  %v1606 = vsub.f32 %v1594, %v694
  %v1607 = vsub.f32 %v1595, %v695
  %v1608 = vsub.f32 %v1596, %v696
  %v1609 = vsub.f32 %v1597, %v697
  %v1610 = vsub.f32 %v1598, %v698
  %v1611 = vsub.f32 %v1599, %v699
  %v1612 = vsub.f32 %v1600, %v700
  %vm1613 = vcmp.gt.f32.partialorder %v1601, 1.0
  %vm1614 = vcmp.gt.f32.partialorder %v1602, 1.0
  %vm1615 = vcmp.gt.f32.partialorder %v1603, 1.0
  %vm1616 = vcmp.gt.f32.partialorder %v1604, 1.0
  %vm1617 = vcmp.gt.f32.partialorder %v1605, 1.0
  %vm1618 = vcmp.gt.f32.partialorder %v1606, 1.0
  %vm1619 = vcmp.gt.f32.partialorder %v1607, 1.0
  %vm1620 = vcmp.gt.f32.partialorder %v1608, 1.0
  %vm1621 = vcmp.gt.f32.partialorder %v1609, 1.0
  %vm1622 = vcmp.gt.f32.partialorder %v1610, 1.0
  %vm1623 = vcmp.gt.f32.partialorder %v1611, 1.0
  %vm1624 = vcmp.gt.f32.partialorder %v1612, 1.0
  %v1625 = vsel %vm1613, 1, 0
  %v1626 = vsel %vm1614, 1, 0
  %v1627 = vsel %vm1615, 1, 0
  %v1628 = vsel %vm1616, 1, 0
  %v1629 = vsel %vm1617, 1, 0
  %v1630 = vsel %vm1618, 1, 0
  %v1631 = vsel %vm1619, 1, 0
  %v1632 = vsel %vm1620, 1, 0
  %v1633 = vsel %vm1621, 1, 0
  %v1634 = vsel %vm1622, 1, 0
  %v1635 = vsel %vm1623, 1, 0
  %v1636 = vsel %vm1624, 1, 0
  %v1637 = vcvt.s32.f32 %v1625
  %v1638 = vcvt.s32.f32 %v1626
  %v1639 = vcvt.s32.f32 %v1627
  %v1640 = vcvt.s32.f32 %v1628
  %v1641 = vcvt.s32.f32 %v1629
  %v1642 = vcvt.s32.f32 %v1630
  %v1643 = vcvt.s32.f32 %v1631
  %v1644 = vcvt.s32.f32 %v1632
  %v1645 = vcvt.s32.f32 %v1633
  %v1646 = vcvt.s32.f32 %v1634
  %v1647 = vcvt.s32.f32 %v1635
  %v1648 = vcvt.s32.f32 %v1636
  %1649 = vst [vmem:[%s5] sm:$0xff] %v1637
  %1650 = vst [vmem:[%s5 + $0x8] sm:$0xff] %v1638
  %1651 = vst [vmem:[%s5 + $0x10] sm:$0xff] %v1639
  %1652 = vst [vmem:[%s5 + $0x18] sm:$0xff] %v1640
  %1653 = vst [vmem:[%s5 + $0x20] sm:$0xff] %v1641
  %1654 = vst [vmem:[%s5 + $0x28] sm:$0xff] %v1642
  %1655 = vst [vmem:[%s5 + $0x30] sm:$0xff] %v1643
  %1656 = vst [vmem:[%s5 + $0x38] sm:$0xff] %v1644
  %1657 = vst [vmem:[%s5 + $0x40] sm:$0xff] %v1645
  %1658 = vst [vmem:[%s5 + $0x48] sm:$0xff] %v1646
  %1659 = vst [vmem:[%s5 + $0x50] sm:$0xff] %v1647
  %1660 = vst [vmem:[%s5 + $0x58] sm:$0xff] %v1648
  %1661 = vst [vmem:[%s6] sm:$0xff] %v1601
  %1662 = vst [vmem:[%s6 + $0x8] sm:$0xff] %v1602
  %1663 = vst [vmem:[%s6 + $0x10] sm:$0xff] %v1603
  %1664 = vst [vmem:[%s6 + $0x18] sm:$0xff] %v1604
  %1665 = vst [vmem:[%s6 + $0x20] sm:$0xff] %v1605
  %1666 = vst [vmem:[%s6 + $0x28] sm:$0xff] %v1606
  %1667 = vst [vmem:[%s6 + $0x30] sm:$0xff] %v1607
  %1668 = vst [vmem:[%s6 + $0x38] sm:$0xff] %v1608
  %1669 = vst [vmem:[%s6 + $0x40] sm:$0xff] %v1609
  %1670 = vst [vmem:[%s6 + $0x48] sm:$0xff] %v1610
  %1671 = vst [vmem:[%s6 + $0x50] sm:$0xff] %v1611
  %1672 = vst [vmem:[%s6 + $0x58] sm:$0xff] %v1612
  // Predicated region
  $region22: #{snn_basic_block_forward.1} parent=0 // pred_check
    _
  $region23: #{snn_basic_block_forward.1} parent=0 // pred_check_branch
    %1674 = sbr.rel (0) target = $region25
  $region24: #{snn_basic_block_forward.1} parent=0 // pred_region
    _
  $region25: #{snn_basic_block_forward.1} parent=0 // pred_fallthru
    _
  // Predicated region
  $region26: #{snn_basic_block_forward.1} parent=0 // pred_check
    _
  $region27: #{snn_basic_block_forward.1} parent=0 // pred_check_branch
    %1676 = sbr.rel (0) target = $region29
  $region28: #{snn_basic_block_forward.1} parent=0 // pred_region
    _
  $region29: #{snn_basic_block_forward.1} parent=0 // pred_fallthru
    _
  // Predicated region
  $region30: #{snn_basic_block_forward.1} parent=0 // pred_check
    _
  $region31: #{snn_basic_block_forward.1} parent=0 // pred_check_branch
    %1678 = sbr.rel (0) target = $region33
  $region32: #{snn_basic_block_forward.1} parent=0 // pred_region
    _
  $region33: #{snn_basic_block_forward.1} parent=0 // pred_fallthru
    _
  // Predicated region
  $region34: #{snn_basic_block_forward.1} parent=0 // pred_check
    _
  $region35: #{snn_basic_block_forward.1} parent=0 // pred_check_branch
    %1680 = sbr.rel (0) target = $region37
  $region36: #{snn_basic_block_forward.1} parent=0 // pred_region
    _
  $region37: #{snn_basic_block_forward.1} parent=0 // pred_fallthru
    _

</llo_original>
